<compile_context>
chip_gen: v7x
topology: tpu7x:2x2x1
jax: 0.10.0
libtpu: 0.0.40
codegen_flags: <defaults>
</compile_context>

<pallas_src>
import functools

import jax
import jax.numpy as jnp
from jax.experimental import pallas as pl
from jax.experimental.pallas import tpu as pltpu


def _round_up(v, m):
    return ((v + m - 1) // m) * m


def _color_attention_kernel(
    x_ref,                    # (1, C, TN)   input tile, channels-major, f32
    w1_ref, b1_ref,           # color_extract conv1 + BN folded: (128, C) f32, (128, 1) f32
    w2_ref, b2_ref,           # color_extract conv2 + BN folded: (64, 128) bf16, (64, 1) f32
    wf_ref, bf_ref,           # fused [red1 ; yellow1 ; reconstruct]: (64+C, 64) bf16, (64+C, 1) f32
    wr2_ref, br2_ref,         # red head    32->1: (32, 1) f32, (1, 1) f32
    wy2_ref, by2_ref,         # yellow head 32->1: (32, 1) f32, (1, 1) f32
    enh_ref, red_ref, yel_ref,
):
    x = x_ref[0].astype(jnp.float32)                       # (C, TN)

    # ---- color_extract: conv1x1+BN+ReLU, conv1x1+BN+ReLU (BN pre-folded) ----
    h1 = jnp.dot(w1_ref[...], x, preferred_element_type=jnp.float32) + b1_ref[...]
    h1 = jnp.maximum(h1, 0.0)                              # (128, TN)
    h2 = jnp.dot(w2_ref[...], h1.astype(jnp.bfloat16),
                 preferred_element_type=jnp.float32) + b2_ref[...]
    h2 = jnp.maximum(h2, 0.0)                              # (64, TN)

    # ---- fused branch matmul: red1 / yellow1 / reconstruct in one MXU pass ----
    fused = jnp.dot(wf_ref[...], h2.astype(jnp.bfloat16),
                    preferred_element_type=jnp.float32) + bf_ref[...]   # (64+C, TN)
    r1 = jnp.maximum(fused[0:32], 0.0)                     # (32, TN)
    y1 = jnp.maximum(fused[32:64], 0.0)                    # (32, TN)
    rec = fused[64:]                                       # (C, TN)   (no ReLU)

    # ---- 32->1 heads on VPU (elementwise) + sublane reduce, then sigmoid ----
    red = jax.nn.sigmoid(
        jnp.sum(r1 * wr2_ref[...], axis=0, keepdims=True) + br2_ref[...])   # (1, TN)
    yel = jax.nn.sigmoid(
        jnp.sum(y1 * wy2_ref[...], axis=0, keepdims=True) + by2_ref[...])   # (1, TN)

    # ---- combine: enhanced = x * (reconstruct * (red + yellow)) ----
    enh = x * (rec * (red + yel))                          # (1,TN) broadcasts over channels
    enh_ref[0] = enh.astype(enh_ref.dtype)
    red_ref[0] = red.astype(red_ref.dtype)
    yel_ref[0] = yel.astype(yel_ref.dtype)


def _fold_bn(w, b, gamma, beta, mean, var, eps=1e-5):
    """Fold eval-mode BatchNorm into the preceding linear layer.

    w: (in, out), b: (out,), BN params: (out,).
    """
    scale = gamma / jnp.sqrt(var + eps)
    w_eff = w * scale[None, :]
    b_eff = (b - mean) * scale + beta
    return w_eff, b_eff


@functools.partial(jax.jit, static_argnames=("tile_n",))
def enhanced_color_attention(x, params, tile_n=2048):
    """x: (B, C, H, W) float32, NCHW (PyTorch convention)."""
    B, C, H, W = x.shape
    HW = H * W

    # --- glue: fold BN into the two color_extract convs ---
    w1, b1 = _fold_bn(params["w1"], params["b1"], params["bn1_g"], params["bn1_b"],
                      params["bn1_m"], params["bn1_v"])
    w2, b2 = _fold_bn(params["w2"], params["b2"], params["bn2_g"], params["bn2_b"],
                      params["bn2_m"], params["bn2_v"])

    # --- weights in "out x in" layout so the kernel computes W @ x (pixels in lanes) ---
    w1t = w1.T.astype(jnp.float32)                               # (128, C)   tiny K=4 matmul, keep f32
    w2t = w2.T.astype(jnp.bfloat16)                              # (64, 128)
    wf = jnp.concatenate(
        [params["wr1"].T, params["wy1"].T, params["wrec"].T],
        axis=0).astype(jnp.bfloat16)                             # (64+C, 64) fused branch weights
    bf = jnp.concatenate(
        [params["br1"], params["by1"], params["brec"]])[:, None].astype(jnp.float32)
    b1c = b1[:, None].astype(jnp.float32)
    b2c = b2[:, None].astype(jnp.float32)
    wr2c = params["wr2"].reshape(32, 1).astype(jnp.float32)
    wy2c = params["wy2"].reshape(32, 1).astype(jnp.float32)
    br2c = params["br2"].reshape(1, 1).astype(jnp.float32)
    by2c = params["by2"].reshape(1, 1).astype(jnp.float32)

    # --- flatten NCHW -> (B, C, H*W): a free reshape, no transposes anywhere ---
    x3 = x.reshape(B, C, HW)
    hw128 = _round_up(HW, 128)
    tn = min(_round_up(tile_n, 128), hw128)        # lane-aligned pixel tile
    hw_p = _round_up(HW, tn)
    if hw_p != HW:
        x3 = jnp.pad(x3, ((0, 0), (0, 0), (0, hw_p - HW)))

    weight_args = [w1t, b1c, w2t, b2c, wf, bf, wr2c, br2c, wy2c, by2c]

    tile_map = lambda b, i: (b, 0, i)

    def full(a):
        return pl.BlockSpec(a.shape, lambda b, i: (0, 0))

    in_specs = [pl.BlockSpec((1, C, tn), tile_map)] + [full(a) for a in weight_args]
    out_specs = [
        pl.BlockSpec((1, C, tn), tile_map),
        pl.BlockSpec((1, 1, tn), tile_map),
        pl.BlockSpec((1, 1, tn), tile_map),
    ]
    out_shape = (
        jax.ShapeDtypeStruct((B, C, hw_p), x.dtype),
        jax.ShapeDtypeStruct((B, 1, hw_p), jnp.float32),
        jax.ShapeDtypeStruct((B, 1, hw_p), jnp.float32),
    )

    # advisory cost estimate for XLA scheduling around the custom call
    rows = B * HW
    flops = 2 * rows * (C * 128 + 128 * 64 + 64 * (64 + C) + 2 * 32) + 12 * rows * C
    bytes_accessed = 4 * rows * (2 * C + 2) + sum(
        int(a.size) * a.dtype.itemsize for a in weight_args)
    cost = pl.CostEstimate(flops=flops, transcendentals=2 * rows,
                           bytes_accessed=bytes_accessed)

    enh3, red3, yel3 = pl.pallas_call(
        _color_attention_kernel,
        out_shape=out_shape,
        grid_spec=pltpu.PrefetchScalarGridSpec(
            num_scalar_prefetch=0,
            grid=(B, hw_p // tn),
            in_specs=in_specs,
            out_specs=out_specs,
        ),
        compiler_params=pltpu.CompilerParams(
            dimension_semantics=("parallel", "parallel")),
        cost_estimate=cost,
    )(x3, *weight_args)

    # --- glue: un-flatten (reshapes only, still NCHW) ---
    enh = enh3[:, :, :HW].reshape(B, C, H, W)
    red = red3[:, :, :HW].reshape(B, 1, H, W)
    yel = yel3[:, :, :HW].reshape(B, 1, H, W)
    return enh, red, yel


def _make_params(key, in_channels):
    """Deterministic synthetic parameters matching the PyTorch module shapes.

    1x1 conv weight (out, in, 1, 1) is stored as an (in, out) matrix."""
    ks = jax.random.split(key, 16)

    def lin(k, cin, cout, scale=0.1):
        kw, kb = jax.random.split(k)
        w = scale * jax.random.normal(kw, (cin, cout), jnp.float32)
        b = scale * jax.random.normal(kb, (cout,), jnp.float32)
        return w, b

    C = in_channels
    w1, b1 = lin(ks[0], C, 128)
    w2, b2 = lin(ks[1], 128, 64)
    wr1, br1 = lin(ks[2], 64, 32)
    wr2, br2 = lin(ks[3], 32, 1)
    wy1, by1 = lin(ks[4], 64, 32)
    wy2, by2 = lin(ks[5], 32, 1)
    wrec, brec = lin(ks[6], 64, C)

    def bn(k, n):
        kg, kb, km, kv = jax.random.split(k, 4)
        return dict(
            g=1.0 + 0.1 * jax.random.normal(kg, (n,), jnp.float32),
            b=0.1 * jax.random.normal(kb, (n,), jnp.float32),
            m=0.1 * jax.random.normal(km, (n,), jnp.float32),
            v=jnp.abs(1.0 + 0.1 * jax.random.normal(kv, (n,), jnp.float32)),
        )

    bn1 = bn(ks[7], 128)
    bn2 = bn(ks[8], 64)

    return dict(
        w1=w1, b1=b1, bn1_g=bn1["g"], bn1_b=bn1["b"], bn1_m=bn1["m"], bn1_v=bn1["v"],
        w2=w2, b2=b2, bn2_g=bn2["g"], bn2_b=bn2["b"], bn2_m=bn2["m"], bn2_v=bn2["v"],
        wr1=wr1, br1=br1, wr2=wr2, br2=br2,
        wy1=wy1, by1=by1, wy2=wy2, by2=by2,
        wrec=wrec, brec=brec,
    )


def _reference(x, params):
    """Pure-JAX f32 reference (same math) for a sanity check."""
    B, C, H, W = x.shape
    w1, b1 = _fold_bn(params["w1"], params["b1"], params["bn1_g"], params["bn1_b"],
                      params["bn1_m"], params["bn1_v"])
    w2, b2 = _fold_bn(params["w2"], params["b2"], params["bn2_g"], params["bn2_b"],
                      params["bn2_m"], params["bn2_v"])
    xr = jnp.transpose(x, (0, 2, 3, 1)).reshape(-1, C)
    h1 = jnp.maximum(xr @ w1 + b1, 0.0)
    h2 = jnp.maximum(h1 @ w2 + b2, 0.0)
    red = jax.nn.sigmoid(jnp.maximum(h2 @ params["wr1"] + params["br1"], 0.0)
                         @ params["wr2"] + params["br2"])
    yel = jax.nn.sigmoid(jnp.maximum(h2 @ params["wy1"] + params["by1"], 0.0)
                         @ params["wy2"] + params["by2"])
    rec = h2 @ params["wrec"] + params["brec"]
    enh = xr * (rec * (red + yel))
    enh = enh.reshape(B, H, W, C).transpose(0, 3, 1, 2)
    red = red.reshape(B, H, W, 1).transpose(0, 3, 1, 2)
    yel = yel.reshape(B, H, W, 1).transpose(0, 3, 1, 2)
    return enh, red, yel


if __name__ == "__main__":
    key = jax.random.PRNGKey(0)
    k_x, k_p = jax.random.split(key)

    B, C, H, W = 2, 4, 16, 16          # small NCHW input, in_channels = 4
    x = jax.random.normal(k_x, (B, C, H, W), jnp.float32)
    params = _make_params(k_p, C)

    enh, red, yel = enhanced_color_attention(x, params)
    jax.block_until_ready((enh, red, yel))

    enh_r, red_r, yel_r = _reference(x, params)
    assert enh.shape == (B, C, H, W)
    assert red.shape == (B, 1, H, W) and yel.shape == (B, 1, H, W)
    # bf16 MXU operands (f32 accumulation) => relaxed tolerance vs f32 reference
    assert jnp.allclose(enh, enh_r, atol=3e-2, rtol=3e-2)
    assert jnp.allclose(red, red_r, atol=2e-2, rtol=2e-2)
    assert jnp.allclose(yel, yel_r, atol=2e-2, rtol=2e-2)

    print("KERNEL_OK")
</pallas_src>

<mosaic_0001>
module attributes {stable_mosaic.version = 11 : i64} {
  func.func @_color_attention_kernel(%arg0: i32, %arg1: i32, %arg2: memref<1x4x256xf32, #tpu.memory_space<vmem>>, %arg3: memref<128x4xf32, #tpu.memory_space<vmem>>, %arg4: memref<128x1xf32, #tpu.memory_space<vmem>>, %arg5: memref<64x128xbf16, #tpu.memory_space<vmem>>, %arg6: memref<64x1xf32, #tpu.memory_space<vmem>>, %arg7: memref<68x64xbf16, #tpu.memory_space<vmem>>, %arg8: memref<68x1xf32, #tpu.memory_space<vmem>>, %arg9: memref<32x1xf32, #tpu.memory_space<vmem>>, %arg10: memref<1x1xf32, #tpu.memory_space<vmem>>, %arg11: memref<32x1xf32, #tpu.memory_space<vmem>>, %arg12: memref<1x1xf32, #tpu.memory_space<vmem>>, %arg13: memref<1x4x256xf32, #tpu.memory_space<vmem>>, %arg14: memref<1x1x256xf32, #tpu.memory_space<vmem>>, %arg15: memref<1x1x256xf32, #tpu.memory_space<vmem>>) attributes {dimension_semantics = [#tpu.dimension_semantics<parallel>, #tpu.dimension_semantics<parallel>], iteration_bounds = array<i64: 2, 1>, scalar_prefetch = 0 : i64, scratch_operands = 0 : i64, tpu.core_type = #tpu.core_type<tc>, window_params = [{transform_indices = @transform_0, window_bounds = array<i64: 1, 4, 256>}, {pipeline_mode = #tpu.pipeline_mode<synchronous>, transform_indices = @transform_1, window_bounds = array<i64: 128, 4>}, {pipeline_mode = #tpu.pipeline_mode<synchronous>, transform_indices = @transform_2, window_bounds = array<i64: 128, 1>}, {pipeline_mode = #tpu.pipeline_mode<synchronous>, transform_indices = @transform_3, window_bounds = array<i64: 64, 128>}, {pipeline_mode = #tpu.pipeline_mode<synchronous>, transform_indices = @transform_4, window_bounds = array<i64: 64, 1>}, {pipeline_mode = #tpu.pipeline_mode<synchronous>, transform_indices = @transform_5, window_bounds = array<i64: 68, 64>}, {pipeline_mode = #tpu.pipeline_mode<synchronous>, transform_indices = @transform_6, window_bounds = array<i64: 68, 1>}, {pipeline_mode = #tpu.pipeline_mode<synchronous>, transform_indices = @transform_7, window_bounds = array<i64: 32, 1>}, {pipeline_mode = #tpu.pipeline_mode<synchronous>, transform_indices = @transform_8, window_bounds = array<i64: 1, 1>}, {pipeline_mode = #tpu.pipeline_mode<synchronous>, transform_indices = @transform_9, window_bounds = array<i64: 32, 1>}, {pipeline_mode = #tpu.pipeline_mode<synchronous>, transform_indices = @transform_10, window_bounds = array<i64: 1, 1>}, {transform_indices = @transform_11, window_bounds = array<i64: 1, 4, 256>}, {transform_indices = @transform_12, window_bounds = array<i64: 1, 1, 256>}, {transform_indices = @transform_13, window_bounds = array<i64: 1, 1, 256>}]} {
    %c0 = arith.constant 0 : index
    %c0_0 = arith.constant 0 : index
    %c0_1 = arith.constant 0 : index
    %0 = vector.load %arg2[%c0, %c0_0, %c0_1] : memref<1x4x256xf32, #tpu.memory_space<vmem>>, vector<1x4x256xf32>
    %1 = vector.shape_cast %0 : vector<1x4x256xf32> to vector<4x256xf32>
    %c0_2 = arith.constant 0 : index
    %c0_3 = arith.constant 0 : index
    %2 = vector.load %arg3[%c0_2, %c0_3] : memref<128x4xf32, #tpu.memory_space<vmem>>, vector<128x4xf32>
    %cst = arith.constant dense<0.000000e+00> : vector<128x256xf32>
    %3 = tpu.matmul %2, %1, %cst {dimension_numbers = #tpu.dot_dimension_numbers<[1], [0], [0], [1], [0, 0, 1, 1], [], []>} : vector<128x4xf32>, vector<4x256xf32>, vector<128x256xf32> -> vector<128x256xf32>
    %c0_4 = arith.constant 0 : index
    %c0_5 = arith.constant 0 : index
    %4 = vector.load %arg4[%c0_4, %c0_5] : memref<128x1xf32, #tpu.memory_space<vmem>>, vector<128x1xf32>
    %5 = vector.broadcast %4 : vector<128x1xf32> to vector<128x256xf32>
    %6 = arith.addf %3, %5 : vector<128x256xf32>
    %cst_6 = arith.constant 0.000000e+00 : f32
    %7 = vector.broadcast %cst_6 : f32 to vector<128x256xf32>
    %8 = arith.maximumf %6, %7 : vector<128x256xf32>
    %c0_7 = arith.constant 0 : index
    %c0_8 = arith.constant 0 : index
    %9 = vector.load %arg5[%c0_7, %c0_8] : memref<64x128xbf16, #tpu.memory_space<vmem>>, vector<64x128xbf16>
    %10 = arith.truncf %8 : vector<128x256xf32> to vector<128x256xbf16>
    %cst_9 = arith.constant dense<0.000000e+00> : vector<64x256xf32>
    %11 = tpu.matmul %9, %10, %cst_9 {dimension_numbers = #tpu.dot_dimension_numbers<[1], [0], [0], [1], [0, 0, 1, 1], [], []>} : vector<64x128xbf16>, vector<128x256xbf16>, vector<64x256xf32> -> vector<64x256xf32>
    %c0_10 = arith.constant 0 : index
    %c0_11 = arith.constant 0 : index
    %12 = vector.load %arg6[%c0_10, %c0_11] : memref<64x1xf32, #tpu.memory_space<vmem>>, vector<64x1xf32>
    %13 = vector.broadcast %12 : vector<64x1xf32> to vector<64x256xf32>
    %14 = arith.addf %11, %13 : vector<64x256xf32>
    %cst_12 = arith.constant 0.000000e+00 : f32
    %15 = vector.broadcast %cst_12 : f32 to vector<64x256xf32>
    %16 = arith.maximumf %14, %15 : vector<64x256xf32>
    %c0_13 = arith.constant 0 : index
    %c0_14 = arith.constant 0 : index
    %17 = vector.load %arg7[%c0_13, %c0_14] : memref<68x64xbf16, #tpu.memory_space<vmem>>, vector<68x64xbf16>
    %18 = arith.truncf %16 : vector<64x256xf32> to vector<64x256xbf16>
    %cst_15 = arith.constant dense<0.000000e+00> : vector<68x256xf32>
    %19 = tpu.matmul %17, %18, %cst_15 {dimension_numbers = #tpu.dot_dimension_numbers<[1], [0], [0], [1], [0, 0, 1, 1], [], []>} : vector<68x64xbf16>, vector<64x256xbf16>, vector<68x256xf32> -> vector<68x256xf32>
    %c0_16 = arith.constant 0 : index
    %c0_17 = arith.constant 0 : index
    %20 = vector.load %arg8[%c0_16, %c0_17] : memref<68x1xf32, #tpu.memory_space<vmem>>, vector<68x1xf32>
    %21 = vector.broadcast %20 : vector<68x1xf32> to vector<68x256xf32>
    %22 = arith.addf %19, %21 : vector<68x256xf32>
    %23 = vector.extract_strided_slice %22 {offsets = [0, 0], sizes = [32, 256], strides = [1, 1]} : vector<68x256xf32> to vector<32x256xf32>
    %cst_18 = arith.constant 0.000000e+00 : f32
    %24 = vector.broadcast %cst_18 : f32 to vector<32x256xf32>
    %25 = arith.maximumf %23, %24 : vector<32x256xf32>
    %26 = vector.extract_strided_slice %22 {offsets = [32, 0], sizes = [32, 256], strides = [1, 1]} : vector<68x256xf32> to vector<32x256xf32>
    %cst_19 = arith.constant 0.000000e+00 : f32
    %27 = vector.broadcast %cst_19 : f32 to vector<32x256xf32>
    %28 = arith.maximumf %26, %27 : vector<32x256xf32>
    %29 = vector.extract_strided_slice %22 {offsets = [64, 0], sizes = [4, 256], strides = [1, 1]} : vector<68x256xf32> to vector<4x256xf32>
    %c0_20 = arith.constant 0 : index
    %c0_21 = arith.constant 0 : index
    %30 = vector.load %arg9[%c0_20, %c0_21] : memref<32x1xf32, #tpu.memory_space<vmem>>, vector<32x1xf32>
    %31 = vector.broadcast %30 : vector<32x1xf32> to vector<32x256xf32>
    %32 = arith.mulf %25, %31 : vector<32x256xf32>
    %cst_22 = arith.constant dense<0.000000e+00> : vector<256xf32>
    %33 = vector.multi_reduction <add>, %32, %cst_22 [0] : vector<32x256xf32> to vector<256xf32>
    %34 = vector.shape_cast %33 : vector<256xf32> to vector<1x256xf32>
    %c0_23 = arith.constant 0 : index
    %c0_24 = arith.constant 0 : index
    %35 = vector.load %arg10[%c0_23, %c0_24] : memref<1x1xf32, #tpu.memory_space<vmem>>, vector<1x1xf32>
    %36 = vector.broadcast %35 : vector<1x1xf32> to vector<1x256xf32>
    %37 = arith.addf %34, %36 : vector<1x256xf32>
    %38 = arith.negf %37 : vector<1x256xf32>
    %39 = math.exp %38 : vector<1x256xf32>
    %cst_25 = arith.constant 1.000000e+00 : f32
    %40 = vector.broadcast %cst_25 : f32 to vector<1x256xf32>
    %41 = arith.addf %40, %39 : vector<1x256xf32>
    %42 = arith.divf %40, %41 : vector<1x256xf32>
    %c0_26 = arith.constant 0 : index
    %c0_27 = arith.constant 0 : index
    %43 = vector.load %arg11[%c0_26, %c0_27] : memref<32x1xf32, #tpu.memory_space<vmem>>, vector<32x1xf32>
    %44 = vector.broadcast %43 : vector<32x1xf32> to vector<32x256xf32>
    %45 = arith.mulf %28, %44 : vector<32x256xf32>
    %cst_28 = arith.constant dense<0.000000e+00> : vector<256xf32>
    %46 = vector.multi_reduction <add>, %45, %cst_28 [0] : vector<32x256xf32> to vector<256xf32>
    %47 = vector.shape_cast %46 : vector<256xf32> to vector<1x256xf32>
    %c0_29 = arith.constant 0 : index
    %c0_30 = arith.constant 0 : index
    %48 = vector.load %arg12[%c0_29, %c0_30] : memref<1x1xf32, #tpu.memory_space<vmem>>, vector<1x1xf32>
    %49 = vector.broadcast %48 : vector<1x1xf32> to vector<1x256xf32>
    %50 = arith.addf %47, %49 : vector<1x256xf32>
    %51 = arith.negf %50 : vector<1x256xf32>
    %52 = math.exp %51 : vector<1x256xf32>
    %cst_31 = arith.constant 1.000000e+00 : f32
    %53 = vector.broadcast %cst_31 : f32 to vector<1x256xf32>
    %54 = arith.addf %53, %52 : vector<1x256xf32>
    %55 = arith.divf %53, %54 : vector<1x256xf32>
    %56 = arith.addf %42, %55 : vector<1x256xf32>
    %57 = vector.broadcast %56 : vector<1x256xf32> to vector<4x256xf32>
    %58 = arith.mulf %29, %57 : vector<4x256xf32>
    %59 = arith.mulf %1, %58 : vector<4x256xf32>
    %c0_32 = arith.constant 0 : index
    %c0_33 = arith.constant 0 : index
    %c0_34 = arith.constant 0 : index
    %60 = vector.load %arg13[%c0_32, %c0_33, %c0_34] : memref<1x4x256xf32, #tpu.memory_space<vmem>>, vector<1x4x256xf32>
    %61 = vector.shape_cast %60 : vector<1x4x256xf32> to vector<4x256xf32>
    %62 = vector.shape_cast %59 : vector<4x256xf32> to vector<1x4x256xf32>
    tpu.vector_store %arg13[%c0_32, %c0_33, %c0_34], %62 {strides = array<i32>} : memref<1x4x256xf32, #tpu.memory_space<vmem>>, vector<1x4x256xf32>,
    %c0_35 = arith.constant 0 : index
    %c0_36 = arith.constant 0 : index
    %c0_37 = arith.constant 0 : index
    %63 = vector.load %arg14[%c0_35, %c0_36, %c0_37] : memref<1x1x256xf32, #tpu.memory_space<vmem>>, vector<1x1x256xf32>
    %64 = vector.shape_cast %63 : vector<1x1x256xf32> to vector<1x256xf32>
    %65 = vector.shape_cast %42 : vector<1x256xf32> to vector<1x1x256xf32>
    tpu.vector_store %arg14[%c0_35, %c0_36, %c0_37], %65 {strides = array<i32>} : memref<1x1x256xf32, #tpu.memory_space<vmem>>, vector<1x1x256xf32>,
    %c0_38 = arith.constant 0 : index
    %c0_39 = arith.constant 0 : index
    %c0_40 = arith.constant 0 : index
    %66 = vector.load %arg15[%c0_38, %c0_39, %c0_40] : memref<1x1x256xf32, #tpu.memory_space<vmem>>, vector<1x1x256xf32>
    %67 = vector.shape_cast %66 : vector<1x1x256xf32> to vector<1x256xf32>
    %68 = vector.shape_cast %55 : vector<1x256xf32> to vector<1x1x256xf32>
    tpu.vector_store %arg15[%c0_38, %c0_39, %c0_40], %68 {strides = array<i32>} : memref<1x1x256xf32, #tpu.memory_space<vmem>>, vector<1x1x256xf32>,
    return
  }
  func.func @transform_0(%arg0: i32, %arg1: i32) -> (i32, i32, i32) {
    %c0_i32 = arith.constant 0 : i32
    %c0_i32_0 = arith.constant 0 : i32
    return %arg0, %c0_i32, %arg1 : i32, i32, i32
  }
  func.func @transform_1(%arg0: i32, %arg1: i32) -> (i32, i32) {
    %c0_i32 = arith.constant 0 : i32
    %c0_i32_0 = arith.constant 0 : i32
    %c0_i32_1 = arith.constant 0 : i32
    return %c0_i32, %c0_i32_0 : i32, i32
  }
  func.func @transform_2(%arg0: i32, %arg1: i32) -> (i32, i32) {
    %c0_i32 = arith.constant 0 : i32
    %c0_i32_0 = arith.constant 0 : i32
    %c0_i32_1 = arith.constant 0 : i32
    return %c0_i32, %c0_i32_0 : i32, i32
  }
  func.func @transform_3(%arg0: i32, %arg1: i32) -> (i32, i32) {
    %c0_i32 = arith.constant 0 : i32
    %c0_i32_0 = arith.constant 0 : i32
    %c0_i32_1 = arith.constant 0 : i32
    return %c0_i32, %c0_i32_0 : i32, i32
  }
  func.func @transform_4(%arg0: i32, %arg1: i32) -> (i32, i32) {
    %c0_i32 = arith.constant 0 : i32
    %c0_i32_0 = arith.constant 0 : i32
    %c0_i32_1 = arith.constant 0 : i32
    return %c0_i32, %c0_i32_0 : i32, i32
  }
  func.func @transform_5(%arg0: i32, %arg1: i32) -> (i32, i32) {
    %c0_i32 = arith.constant 0 : i32
    %c0_i32_0 = arith.constant 0 : i32
    %c0_i32_1 = arith.constant 0 : i32
    return %c0_i32, %c0_i32_0 : i32, i32
  }
  func.func @transform_6(%arg0: i32, %arg1: i32) -> (i32, i32) {
    %c0_i32 = arith.constant 0 : i32
    %c0_i32_0 = arith.constant 0 : i32
    %c0_i32_1 = arith.constant 0 : i32
    return %c0_i32, %c0_i32_0 : i32, i32
  }
  func.func @transform_7(%arg0: i32, %arg1: i32) -> (i32, i32) {
    %c0_i32 = arith.constant 0 : i32
    %c0_i32_0 = arith.constant 0 : i32
    %c0_i32_1 = arith.constant 0 : i32
    return %c0_i32, %c0_i32_0 : i32, i32
  }
  func.func @transform_8(%arg0: i32, %arg1: i32) -> (i32, i32) {
    %c0_i32 = arith.constant 0 : i32
    %c0_i32_0 = arith.constant 0 : i32
    %c0_i32_1 = arith.constant 0 : i32
    return %c0_i32, %c0_i32_0 : i32, i32
  }
  func.func @transform_9(%arg0: i32, %arg1: i32) -> (i32, i32) {
    %c0_i32 = arith.constant 0 : i32
    %c0_i32_0 = arith.constant 0 : i32
    %c0_i32_1 = arith.constant 0 : i32
    return %c0_i32, %c0_i32_0 : i32, i32
  }
  func.func @transform_10(%arg0: i32, %arg1: i32) -> (i32, i32) {
    %c0_i32 = arith.constant 0 : i32
    %c0_i32_0 = arith.constant 0 : i32
    %c0_i32_1 = arith.constant 0 : i32
    return %c0_i32, %c0_i32_0 : i32, i32
  }
  func.func @transform_11(%arg0: i32, %arg1: i32) -> (i32, i32, i32) {
    %c0_i32 = arith.constant 0 : i32
    %c0_i32_0 = arith.constant 0 : i32
    return %arg0, %c0_i32, %arg1 : i32, i32, i32
  }
  func.func @transform_12(%arg0: i32, %arg1: i32) -> (i32, i32, i32) {
    %c0_i32 = arith.constant 0 : i32
    %c0_i32_0 = arith.constant 0 : i32
    return %arg0, %c0_i32, %arg1 : i32, i32, i32
  }
  func.func @transform_13(%arg0: i32, %arg1: i32) -> (i32, i32, i32) {
    %c0_i32 = arith.constant 0 : i32
    %c0_i32_0 = arith.constant 0 : i32
    return %arg0, %c0_i32, %arg1 : i32, i32, i32
  }
}

</mosaic_0001>

<llo_original>
// kernel: enhanced_color_attention.1
$region0: #{enhanced_color_attention.1}
  #allocation0 [shape = 'u32[]', space=smem, size = 0x4, offset = 0x4, fixed_abs, tag = 'smem constant byte address 0x4 - core index']
  #allocation1 [shape = 'u32[144,128]{1,0:T(1,128)}', space=vmem, size = 0x12000, scoped, tag = 'internal scratch']
  #allocation2 [shape = 'f32[1,1]{1,0:T(1,128)S(1)}', space=vmem, size = 0x200, scoped, tag = 'scoped memory for enhanced_color_attention.1']
  #allocation3 [shape = 'f32[1,1]{1,0:T(1,128)S(1)}', space=vmem, size = 0x200, scoped, tag = 'scoped memory for enhanced_color_attention.1']
  %s0 = inlined_call_operand.vmem [shape: f32[2,4,256], index: 0, kind: input, shape index: {}]
  %s1 = inlined_call_operand.vmem [shape: f32[128,4], index: 1, kind: input, shape index: {}]
  %s2 = inlined_call_operand.vmem [shape: f32[128,1], index: 2, kind: input, shape index: {}]
  %s3 = inlined_call_operand.vmem [shape: bf16[64,128], index: 3, kind: input, shape index: {}]
  %s4 = inlined_call_operand.vmem [shape: f32[64,1], index: 4, kind: input, shape index: {}]
  %s5 = inlined_call_operand.vmem [shape: bf16[68,64], index: 5, kind: input, shape index: {}]
  %s6 = inlined_call_operand.vmem [shape: f32[68,1], index: 6, kind: input, shape index: {}]
  %s7 = inlined_call_operand.vmem [shape: f32[32,1], index: 7, kind: input, shape index: {}]
  %s8 = inlined_call_operand.<no memory space> [shape: f32[1,1], index: 8, kind: input, shape index: {}]
  %s9 = inlined_call_operand.vmem [shape: f32[32,1], index: 9, kind: input, shape index: {}]
  %s10 = inlined_call_operand.<no memory space> [shape: f32[1,1], index: 10, kind: input, shape index: {}]
  %s11 = inlined_call_operand.vmem [shape: f32[2,4,256], index: 11, kind: output, shape index: {0}]
  %s12 = inlined_call_operand.vmem [shape: f32[2,1,256], index: 12, kind: output, shape index: {1}]
  %s13 = inlined_call_operand.vmem [shape: f32[2,1,256], index: 13, kind: output, shape index: {2}]
  %14 = xla_tuple %s11, %s12, %s13
  %s15 = sld [smem:[#allocation0]]
  $region93: #{enhanced_color_attention.1} parent=0
    _
  %s17 = ssub.s32 1, %s15
  %s18 = scalar_select 0, %s17, %s15
  %v19 = vstv %s8
  %20 = vst [vmem:[#allocation2] sm:$0x1] %v19
  %v21 = vstv %s10
  %22 = vst [vmem:[#allocation3] sm:$0x1] %v21
  loop: start=0, step=1, limit=4
  $region2: #{enhanced_color_attention.1} parent=0 // loop_pre_header
    _
  $region3: #{enhanced_color_attention.1} parent=0 // loop_header
    %s24 = sphi 0, %s28
    %p25 = scmp.ge.s32.totalorder %s24, 4
    %s31 = sphi 0, %s43
    %s32 = sphi 0, %s39
    %s33 = sphi 0, %s31
    %s34 = sphi 0, %s32
    %s35 = sphi 0, %s33
    %s36 = sphi 0, %s34
    %s48 = sphi 0, %s50
    %s51 = sphi 0, %s48
    %s52 = sphi 0, %s51
    %s68 = sphi 0, %s52
    %s72 = sphi 0, %s72
    %s74 = sphi 0, %s72
    %s75 = sphi 0, %s74
    %s89 = sphi 0, %s75
    %s93 = sphi 0, %s93
    %s95 = sphi 0, %s93
    %s96 = sphi 0, %s95
    %s110 = sphi 0, %s96
    %s114 = sphi 0, %s114
    %s116 = sphi 0, %s114
    %s117 = sphi 0, %s116
    %s131 = sphi 0, %s117
    %s135 = sphi 0, %s135
    %s137 = sphi 0, %s135
    %s138 = sphi 0, %s137
    %s152 = sphi 0, %s138
    %s156 = sphi 0, %s156
    %s158 = sphi 0, %s156
    %s159 = sphi 0, %s158
    %s173 = sphi 0, %s159
    %s177 = sphi 0, %s177
    %s179 = sphi 0, %s177
    %s180 = sphi 0, %s179
    %s194 = sphi 0, %s180
    %s198 = sphi 0, %s198
    %s200 = sphi 0, %s198
    %s201 = sphi 0, %s200
    %s215 = sphi 0, %s201
    %s219 = sphi 0, %s219
    %s221 = sphi 0, %s219
    %s222 = sphi 0, %s221
    %s236 = sphi 0, %s222
    %s240 = sphi 0, %s240
    %s242 = sphi 0, %s240
    %s243 = sphi 0, %s242
    %s257 = sphi 0, %s243
    %s261 = sphi 0, %s261
    %s263 = sphi 0, %s261
    %s264 = sphi 0, %s263
    %s278 = sphi 0, %s264
    %s286 = sphi 0, %s288
    %s289 = sphi 0, %s286
    %s290 = sphi 0, %s289
    %s306 = sphi 0, %s290
    %s314 = sphi 0, %s316
    %s317 = sphi 0, %s314
    %s318 = sphi 0, %s317
    %s334 = sphi 0, %s318
    %s342 = sphi 0, %s344
    %s345 = sphi 0, %s342
    %s346 = sphi 0, %s345
    %s362 = sphi 0, %s346
  $region4: #{enhanced_color_attention.1} parent=0 // loop_header_branch
    %27 = sbr.rel (%p25) target = $region8
  $region5: #{enhanced_color_attention.1} parent=0 // loop_body
    %s29 = ssub.s32 %s24, 1
    %s30 = ssub.s32 %s24, 2
    %s37 = sadd.s32 1, %s32
    %p38 = scmp.ge.s32.totalorder %s37, 1
    %s39 = scalar_select %p38, 0, %s37
    %s40 = sadd.s32 1, %s31
    %s41 = scalar_select %p38, %s40, %s31
    %p42 = scmp.ge.s32.totalorder %s41, 2
    %s43 = scalar_select %p42, 0, %s41
    %s44 = ssub.s32 %s31, %s43
    %s45 = ssub.s32 %s32, %s39
    %s46 = sor.u32 %s44, %s45
    %p47 = scmp.eq.s32.totalorder %s46, 0
    %s49 = sadd.s32 %s48, 1
    %s50 = scalar_select %p47, %s48, %s49
    %p53 = pneg %p47
    %p54 = scmp.eq.s32.totalorder %s24, 1
    %p55 = por %p53, %p54
    %p56 = scmp.ne.s32.totalorder %s48, %s51
    %p57 = scmp.eq.s32.totalorder %s24, 0
    %p58 = por %p56, %p57
    %p59 = scmp.ne.s32.totalorder %s48, %s51
    %p60 = scmp.eq.s32.totalorder %s29, 1
    %p61 = por %p59, %p60
    %p62 = scmp.ne.s32.totalorder %s51, %s52
    %p63 = scmp.eq.s32.totalorder %s29, 0
    %p64 = por %p62, %p63
    %p65 = scmp.ne.s32.totalorder %s51, %s52
    %p66 = scmp.eq.s32.totalorder %s30, 1
    %p67 = por %p65, %p66
    %p69 = scmp.ne.s32.totalorder %s52, %s68
    %p70 = scmp.eq.s32.totalorder %s30, 0
    %p71 = por %p69, %p70
    %s73 = sadd.s32 %s72, 1
    %p76 = scmp.eq.s32.totalorder %s24, 1
    %p77 = scmp.ne.s32.totalorder %s72, %s74
    %p78 = scmp.eq.s32.totalorder %s24, 0
    %p79 = por %p77, %p78
    %p80 = scmp.ne.s32.totalorder %s72, %s74
    %p81 = scmp.eq.s32.totalorder %s29, 1
    %p82 = por %p80, %p81
    %p83 = scmp.ne.s32.totalorder %s74, %s75
    %p84 = scmp.eq.s32.totalorder %s29, 0
    %p85 = por %p83, %p84
    %p86 = scmp.ne.s32.totalorder %s74, %s75
    %p87 = scmp.eq.s32.totalorder %s30, 1
    %p88 = por %p86, %p87
    %p90 = scmp.ne.s32.totalorder %s75, %s89
    %p91 = scmp.eq.s32.totalorder %s30, 0
    %p92 = por %p90, %p91
    %s94 = sadd.s32 %s93, 1
    %p97 = scmp.eq.s32.totalorder %s24, 1
    %p98 = scmp.ne.s32.totalorder %s93, %s95
    %p99 = scmp.eq.s32.totalorder %s24, 0
    %p100 = por %p98, %p99
    %p101 = scmp.ne.s32.totalorder %s93, %s95
    %p102 = scmp.eq.s32.totalorder %s29, 1
    %p103 = por %p101, %p102
    %p104 = scmp.ne.s32.totalorder %s95, %s96
    %p105 = scmp.eq.s32.totalorder %s29, 0
    %p106 = por %p104, %p105
    %p107 = scmp.ne.s32.totalorder %s95, %s96
    %p108 = scmp.eq.s32.totalorder %s30, 1
    %p109 = por %p107, %p108
    %p111 = scmp.ne.s32.totalorder %s96, %s110
    %p112 = scmp.eq.s32.totalorder %s30, 0
    %p113 = por %p111, %p112
    %s115 = sadd.s32 %s114, 1
    %p118 = scmp.eq.s32.totalorder %s24, 1
    %p119 = scmp.ne.s32.totalorder %s114, %s116
    %p120 = scmp.eq.s32.totalorder %s24, 0
    %p121 = por %p119, %p120
    %p122 = scmp.ne.s32.totalorder %s114, %s116
    %p123 = scmp.eq.s32.totalorder %s29, 1
    %p124 = por %p122, %p123
    %p125 = scmp.ne.s32.totalorder %s116, %s117
    %p126 = scmp.eq.s32.totalorder %s29, 0
    %p127 = por %p125, %p126
    %p128 = scmp.ne.s32.totalorder %s116, %s117
    %p129 = scmp.eq.s32.totalorder %s30, 1
    %p130 = por %p128, %p129
    %p132 = scmp.ne.s32.totalorder %s117, %s131
    %p133 = scmp.eq.s32.totalorder %s30, 0
    %p134 = por %p132, %p133
    %s136 = sadd.s32 %s135, 1
    %p139 = scmp.eq.s32.totalorder %s24, 1
    %p140 = scmp.ne.s32.totalorder %s135, %s137
    %p141 = scmp.eq.s32.totalorder %s24, 0
    %p142 = por %p140, %p141
    %p143 = scmp.ne.s32.totalorder %s135, %s137
    %p144 = scmp.eq.s32.totalorder %s29, 1
    %p145 = por %p143, %p144
    %p146 = scmp.ne.s32.totalorder %s137, %s138
    %p147 = scmp.eq.s32.totalorder %s29, 0
    %p148 = por %p146, %p147
    %p149 = scmp.ne.s32.totalorder %s137, %s138
    %p150 = scmp.eq.s32.totalorder %s30, 1
    %p151 = por %p149, %p150
    %p153 = scmp.ne.s32.totalorder %s138, %s152
    %p154 = scmp.eq.s32.totalorder %s30, 0
    %p155 = por %p153, %p154
    %s157 = sadd.s32 %s156, 1
    %p160 = scmp.eq.s32.totalorder %s24, 1
    %p161 = scmp.ne.s32.totalorder %s156, %s158
    %p162 = scmp.eq.s32.totalorder %s24, 0
    %p163 = por %p161, %p162
    %p164 = scmp.ne.s32.totalorder %s156, %s158
    %p165 = scmp.eq.s32.totalorder %s29, 1
    %p166 = por %p164, %p165
    %p167 = scmp.ne.s32.totalorder %s158, %s159
    %p168 = scmp.eq.s32.totalorder %s29, 0
    %p169 = por %p167, %p168
    %p170 = scmp.ne.s32.totalorder %s158, %s159
    %p171 = scmp.eq.s32.totalorder %s30, 1
    %p172 = por %p170, %p171
    %p174 = scmp.ne.s32.totalorder %s159, %s173
    %p175 = scmp.eq.s32.totalorder %s30, 0
    %p176 = por %p174, %p175
    %s178 = sadd.s32 %s177, 1
    %p181 = scmp.eq.s32.totalorder %s24, 1
    %p182 = scmp.ne.s32.totalorder %s177, %s179
    %p183 = scmp.eq.s32.totalorder %s24, 0
    %p184 = por %p182, %p183
    %p185 = scmp.ne.s32.totalorder %s177, %s179
    %p186 = scmp.eq.s32.totalorder %s29, 1
    %p187 = por %p185, %p186
    %p188 = scmp.ne.s32.totalorder %s179, %s180
    %p189 = scmp.eq.s32.totalorder %s29, 0
    %p190 = por %p188, %p189
    %p191 = scmp.ne.s32.totalorder %s179, %s180
    %p192 = scmp.eq.s32.totalorder %s30, 1
    %p193 = por %p191, %p192
    %p195 = scmp.ne.s32.totalorder %s180, %s194
    %p196 = scmp.eq.s32.totalorder %s30, 0
    %p197 = por %p195, %p196
    %s199 = sadd.s32 %s198, 1
    %p202 = scmp.eq.s32.totalorder %s24, 1
    %p203 = scmp.ne.s32.totalorder %s198, %s200
    %p204 = scmp.eq.s32.totalorder %s24, 0
    %p205 = por %p203, %p204
    %p206 = scmp.ne.s32.totalorder %s198, %s200
    %p207 = scmp.eq.s32.totalorder %s29, 1
    %p208 = por %p206, %p207
    %p209 = scmp.ne.s32.totalorder %s200, %s201
    %p210 = scmp.eq.s32.totalorder %s29, 0
    %p211 = por %p209, %p210
    %p212 = scmp.ne.s32.totalorder %s200, %s201
    %p213 = scmp.eq.s32.totalorder %s30, 1
    %p214 = por %p212, %p213
    %p216 = scmp.ne.s32.totalorder %s201, %s215
    %p217 = scmp.eq.s32.totalorder %s30, 0
    %p218 = por %p216, %p217
    %s220 = sadd.s32 %s219, 1
    %p223 = scmp.eq.s32.totalorder %s24, 1
    %p224 = scmp.ne.s32.totalorder %s219, %s221
    %p225 = scmp.eq.s32.totalorder %s24, 0
    %p226 = por %p224, %p225
    %p227 = scmp.ne.s32.totalorder %s219, %s221
    %p228 = scmp.eq.s32.totalorder %s29, 1
    %p229 = por %p227, %p228
    %p230 = scmp.ne.s32.totalorder %s221, %s222
    %p231 = scmp.eq.s32.totalorder %s29, 0
    %p232 = por %p230, %p231
    %p233 = scmp.ne.s32.totalorder %s221, %s222
    %p234 = scmp.eq.s32.totalorder %s30, 1
    %p235 = por %p233, %p234
    %p237 = scmp.ne.s32.totalorder %s222, %s236
    %p238 = scmp.eq.s32.totalorder %s30, 0
    %p239 = por %p237, %p238
    %s241 = sadd.s32 %s240, 1
    %p244 = scmp.eq.s32.totalorder %s24, 1
    %p245 = scmp.ne.s32.totalorder %s240, %s242
    %p246 = scmp.eq.s32.totalorder %s24, 0
    %p247 = por %p245, %p246
    %p248 = scmp.ne.s32.totalorder %s240, %s242
    %p249 = scmp.eq.s32.totalorder %s29, 1
    %p250 = por %p248, %p249
    %p251 = scmp.ne.s32.totalorder %s242, %s243
    %p252 = scmp.eq.s32.totalorder %s29, 0
    %p253 = por %p251, %p252
    %p254 = scmp.ne.s32.totalorder %s242, %s243
    %p255 = scmp.eq.s32.totalorder %s30, 1
    %p256 = por %p254, %p255
    %p258 = scmp.ne.s32.totalorder %s243, %s257
    %p259 = scmp.eq.s32.totalorder %s30, 0
    %p260 = por %p258, %p259
    %s262 = sadd.s32 %s261, 1
    %p265 = scmp.eq.s32.totalorder %s24, 1
    %p266 = scmp.ne.s32.totalorder %s261, %s263
    %p267 = scmp.eq.s32.totalorder %s24, 0
    %p268 = por %p266, %p267
    %p269 = scmp.ne.s32.totalorder %s261, %s263
    %p270 = scmp.eq.s32.totalorder %s29, 1
    %p271 = por %p269, %p270
    %p272 = scmp.ne.s32.totalorder %s263, %s264
    %p273 = scmp.eq.s32.totalorder %s29, 0
    %p274 = por %p272, %p273
    %p275 = scmp.ne.s32.totalorder %s263, %s264
    %p276 = scmp.eq.s32.totalorder %s30, 1
    %p277 = por %p275, %p276
    %p279 = scmp.ne.s32.totalorder %s264, %s278
    %p280 = scmp.eq.s32.totalorder %s30, 0
    %p281 = por %p279, %p280
    %s282 = ssub.s32 %s31, %s43
    %s283 = ssub.s32 %s32, %s39
    %s284 = sor.u32 %s282, %s283
    %p285 = scmp.eq.s32.totalorder %s284, 0
    %s287 = sadd.s32 %s286, 1
    %s288 = scalar_select %p285, %s286, %s287
    %p291 = pneg %p285
    %p292 = scmp.eq.s32.totalorder %s24, 1
    %p293 = por %p291, %p292
    %p294 = scmp.ne.s32.totalorder %s286, %s289
    %p295 = scmp.eq.s32.totalorder %s24, 0
    %p296 = por %p294, %p295
    %p297 = scmp.ne.s32.totalorder %s286, %s289
    %p298 = scmp.eq.s32.totalorder %s29, 1
    %p299 = por %p297, %p298
    %p300 = scmp.ne.s32.totalorder %s289, %s290
    %p301 = scmp.eq.s32.totalorder %s29, 0
    %p302 = por %p300, %p301
    %p303 = scmp.ne.s32.totalorder %s289, %s290
    %p304 = scmp.eq.s32.totalorder %s30, 1
    %p305 = por %p303, %p304
    %p307 = scmp.ne.s32.totalorder %s290, %s306
    %p308 = scmp.eq.s32.totalorder %s30, 0
    %p309 = por %p307, %p308
    %s310 = ssub.s32 %s31, %s43
    %s311 = ssub.s32 %s32, %s39
    %s312 = sor.u32 %s310, %s311
    %p313 = scmp.eq.s32.totalorder %s312, 0
    %s315 = sadd.s32 %s314, 1
    %s316 = scalar_select %p313, %s314, %s315
    %p319 = pneg %p313
    %p320 = scmp.eq.s32.totalorder %s24, 1
    %p321 = por %p319, %p320
    %p322 = scmp.ne.s32.totalorder %s314, %s317
    %p323 = scmp.eq.s32.totalorder %s24, 0
    %p324 = por %p322, %p323
    %p325 = scmp.ne.s32.totalorder %s314, %s317
    %p326 = scmp.eq.s32.totalorder %s29, 1
    %p327 = por %p325, %p326
    %p328 = scmp.ne.s32.totalorder %s317, %s318
    %p329 = scmp.eq.s32.totalorder %s29, 0
    %p330 = por %p328, %p329
    %p331 = scmp.ne.s32.totalorder %s317, %s318
    %p332 = scmp.eq.s32.totalorder %s30, 1
    %p333 = por %p331, %p332
    %p335 = scmp.ne.s32.totalorder %s318, %s334
    %p336 = scmp.eq.s32.totalorder %s30, 0
    %p337 = por %p335, %p336
    %s338 = ssub.s32 %s31, %s43
    %s339 = ssub.s32 %s32, %s39
    %s340 = sor.u32 %s338, %s339
    %p341 = scmp.eq.s32.totalorder %s340, 0
    %s343 = sadd.s32 %s342, 1
    %s344 = scalar_select %p341, %s342, %s343
    %p347 = pneg %p341
    %p348 = scmp.eq.s32.totalorder %s24, 1
    %p349 = por %p347, %p348
    %p350 = scmp.ne.s32.totalorder %s342, %s345
    %p351 = scmp.eq.s32.totalorder %s24, 0
    %p352 = por %p350, %p351
    %p353 = scmp.ne.s32.totalorder %s342, %s345
    %p354 = scmp.eq.s32.totalorder %s29, 1
    %p355 = por %p353, %p354
    %p356 = scmp.ne.s32.totalorder %s345, %s346
    %p357 = scmp.eq.s32.totalorder %s29, 0
    %p358 = por %p356, %p357
    %p359 = scmp.ne.s32.totalorder %s345, %s346
    %p360 = scmp.eq.s32.totalorder %s30, 1
    %p361 = por %p359, %p360
    %p363 = scmp.ne.s32.totalorder %s346, %s362
    %p364 = scmp.eq.s32.totalorder %s30, 0
    %p365 = por %p363, %p364
    %p366 = scmp.le.s32.totalorder 1, %s24
    %p367 = scmp.lt.s32.totalorder %s24, 3
    %p368 = pnand %p366, %p367
    %p369 = pneg %p368
    // Predicated region
    $region9: #{enhanced_color_attention.1} parent=5 // pred_check
      _
    $region10: #{enhanced_color_attention.1} parent=5 // pred_check_branch
      %371 = sbr.rel (%p368) target = $region12
    $region11: #{enhanced_color_attention.1} parent=5 // pred_region
      %s372 = ssub.s32 %s24, 1
      // Predicated region
      $region13: #{enhanced_color_attention.1} parent=11 // pred_check
        %p373 = pneg %p85
      $region14: #{enhanced_color_attention.1} parent=11 // pred_check_branch
        %375 = sbr.rel (%p373) target = $region16
      $region15: #{enhanced_color_attention.1} parent=11 // pred_region
        _
      $region16: #{enhanced_color_attention.1} parent=11 // pred_fallthru
        _
      // Predicated region
      $region17: #{enhanced_color_attention.1} parent=11 // pred_check
        %p376 = pneg %p106
      $region18: #{enhanced_color_attention.1} parent=11 // pred_check_branch
        %378 = sbr.rel (%p376) target = $region20
      $region19: #{enhanced_color_attention.1} parent=11 // pred_region
        _
      $region20: #{enhanced_color_attention.1} parent=11 // pred_fallthru
        _
      // Predicated region
      $region21: #{enhanced_color_attention.1} parent=11 // pred_check
        %p379 = pneg %p127
      $region22: #{enhanced_color_attention.1} parent=11 // pred_check_branch
        %381 = sbr.rel (%p379) target = $region24
      $region23: #{enhanced_color_attention.1} parent=11 // pred_region
        _
      $region24: #{enhanced_color_attention.1} parent=11 // pred_fallthru
        _
      // Predicated region
      $region25: #{enhanced_color_attention.1} parent=11 // pred_check
        %p382 = pneg %p148
      $region26: #{enhanced_color_attention.1} parent=11 // pred_check_branch
        %384 = sbr.rel (%p382) target = $region28
      $region27: #{enhanced_color_attention.1} parent=11 // pred_region
        _
      $region28: #{enhanced_color_attention.1} parent=11 // pred_fallthru
        _
      // Predicated region
      $region29: #{enhanced_color_attention.1} parent=11 // pred_check
        %p385 = pneg %p169
      $region30: #{enhanced_color_attention.1} parent=11 // pred_check_branch
        %387 = sbr.rel (%p385) target = $region32
      $region31: #{enhanced_color_attention.1} parent=11 // pred_region
        _
      $region32: #{enhanced_color_attention.1} parent=11 // pred_fallthru
        _
      // Predicated region
      $region33: #{enhanced_color_attention.1} parent=11 // pred_check
        %p388 = pneg %p190
      $region34: #{enhanced_color_attention.1} parent=11 // pred_check_branch
        %390 = sbr.rel (%p388) target = $region36
      $region35: #{enhanced_color_attention.1} parent=11 // pred_region
        _
      $region36: #{enhanced_color_attention.1} parent=11 // pred_fallthru
        _
      // Predicated region
      $region37: #{enhanced_color_attention.1} parent=11 // pred_check
        %p391 = pneg %p211
      $region38: #{enhanced_color_attention.1} parent=11 // pred_check_branch
        %393 = sbr.rel (%p391) target = $region40
      $region39: #{enhanced_color_attention.1} parent=11 // pred_region
        _
      $region40: #{enhanced_color_attention.1} parent=11 // pred_fallthru
        _
      // Predicated region
      $region41: #{enhanced_color_attention.1} parent=11 // pred_check
        %p394 = pneg %p232
      $region42: #{enhanced_color_attention.1} parent=11 // pred_check_branch
        %396 = sbr.rel (%p394) target = $region44
      $region43: #{enhanced_color_attention.1} parent=11 // pred_region
        _
      $region44: #{enhanced_color_attention.1} parent=11 // pred_fallthru
        _
      // Predicated region
      $region45: #{enhanced_color_attention.1} parent=11 // pred_check
        %p397 = pneg %p253
      $region46: #{enhanced_color_attention.1} parent=11 // pred_check_branch
        %399 = sbr.rel (%p397) target = $region48
      $region47: #{enhanced_color_attention.1} parent=11 // pred_region
        _
      $region48: #{enhanced_color_attention.1} parent=11 // pred_fallthru
        _
      // Predicated region
      $region49: #{enhanced_color_attention.1} parent=11 // pred_check
        %p400 = pneg %p274
      $region50: #{enhanced_color_attention.1} parent=11 // pred_check_branch
        %402 = sbr.rel (%p400) target = $region52
      $region51: #{enhanced_color_attention.1} parent=11 // pred_region
        _
      $region52: #{enhanced_color_attention.1} parent=11 // pred_fallthru
        _
    $region12: #{enhanced_color_attention.1} parent=5 // pred_fallthru
      _
    %p403 = scmp.lt.s32.totalorder %s24, 2
    // Predicated region
    $region53: #{enhanced_color_attention.1} parent=5 // pred_check
      %p404 = pneg %p403
    $region54: #{enhanced_color_attention.1} parent=5 // pred_check_branch
      %406 = sbr.rel (%p404) target = $region56
    $region55: #{enhanced_color_attention.1} parent=5 // pred_region
      // Predicated region
      $region57: #{enhanced_color_attention.1} parent=55 // pred_check
        %p407 = pneg %p58
      $region58: #{enhanced_color_attention.1} parent=55 // pred_check_branch
        %409 = sbr.rel (%p407) target = $region60
      $region59: #{enhanced_color_attention.1} parent=55 // pred_region
        %s410 = smul.u32 2, %s32
        %p411 = scmp.lt.s32.totalorder %s31, 1
        %s412 = scalar_select %p411, %s31, 1
        %p413 = scmp.lt.s32.totalorder %s410, 1
        %s414 = scalar_select %p413, %s410, 1
        %s415 = smul.addr %s412, 2
        %s416 = sadd.s32 %s414, %s415
        %s417 = smul.addr %s416, 4
        %s418 = scalar_lea.vmem %s0, %s417
        %s419 = smul.u32 2, %s32
      $region60: #{enhanced_color_attention.1} parent=55 // pred_fallthru
        _
    $region56: #{enhanced_color_attention.1} parent=5 // pred_fallthru
      _
    %p420 = scmp.le.s32.totalorder 1, %s24
    %p421 = scmp.lt.s32.totalorder %s24, 3
    %p422 = pnand %p420, %p421
    %p423 = pneg %p422
    // Predicated region
    $region61: #{enhanced_color_attention.1} parent=5 // pred_check
      _
    $region62: #{enhanced_color_attention.1} parent=5 // pred_check_branch
      %425 = sbr.rel (%p422) target = $region64
    $region63: #{enhanced_color_attention.1} parent=5 // pred_region
      %s426 = ssub.s32 %s24, 1
      %s427 = smul.u32 2, %s34
      %p428 = scmp.lt.s32.totalorder %s33, 1
      %s429 = scalar_select %p428, %s33, 1
      %p430 = scmp.lt.s32.totalorder %s427, 1
      %s431 = scalar_select %p430, %s427, 1
      %s432 = smul.addr %s429, 2
      %s433 = sadd.s32 %s431, %s432
      %s434 = smul.addr %s433, 4
      %s435 = scalar_lea.vmem %s0, %s434
      %p436 = pneg %p64
      %p437 = pneg %p61
      %p438 = pneg %p85
      %p439 = pneg %p82
      %p440 = pneg %p106
      %p441 = pneg %p103
      %p442 = pneg %p127
      %p443 = pneg %p124
      %p444 = pneg %p148
      %p445 = pneg %p145
      %p446 = pneg %p169
      %p447 = pneg %p166
      %p448 = pneg %p190
      %p449 = pneg %p187
      %p450 = pneg %p211
      %p451 = pneg %p208
      %p452 = pneg %p232
      %p453 = pneg %p229
      %p454 = pneg %p253
      %p455 = pneg %p250
      %p456 = pneg %p274
      %p457 = pneg %p271
      %p458 = pneg %p302
      %p459 = pneg %p299
      %s460 = smul.u32 2, %s34
      %p461 = scmp.lt.s32.totalorder %s33, 1
      %s462 = scalar_select %p461, %s33, 1
      %p463 = scmp.lt.s32.totalorder %s460, 1
      %s464 = scalar_select %p463, %s460, 1
      %s465 = smul.addr %s462, 2
      %s466 = sadd.s32 %s464, %s465
      %s467 = smul.addr %s466, 4
      %s468 = scalar_lea.vmem %s11, %s467
      %p469 = pneg %p330
      %p470 = pneg %p327
      %s471 = smul.u32 2, %s34
      %p472 = scmp.lt.s32.totalorder %s33, 1
      %s473 = scalar_select %p472, %s33, 1
      %p474 = scmp.lt.s32.totalorder %s471, 1
      %s475 = scalar_select %p474, %s471, 1
      %s476 = smul.addr %s473, 2
      %s477 = sadd.s32 %s475, %s476
      %s478 = scalar_lea.vmem %s12, %s477
      %p479 = pneg %p358
      %p480 = pneg %p355
      %s481 = smul.u32 2, %s34
      %p482 = scmp.lt.s32.totalorder %s33, 1
      %s483 = scalar_select %p482, %s33, 1
      %p484 = scmp.lt.s32.totalorder %s481, 1
      %s485 = scalar_select %p484, %s481, 1
      %s486 = smul.addr %s483, 2
      %s487 = sadd.s32 %s485, %s486
      %s488 = scalar_lea.vmem %s13, %s487
      %s489 = smul.u32 2, %s34
      %p490 = scmp.lt.s32.totalorder %s33, 1
      %s491 = scalar_select %p490, %s33, 1
      %p492 = scmp.lt.s32.totalorder %s489, 1
      %s493 = scalar_select %p492, %s489, 1
      %s494 = smul.addr %s491, 2
      %s495 = sadd.s32 %s493, %s494
      %s496 = smul.addr %s495, 4
      %s497 = scalar_lea.vmem %s0, %s496
      %s498 = smul.u32 2, %s34
      %s499 = smul.u32 2, %s34
      %p500 = scmp.lt.s32.totalorder %s33, 1
      %s501 = scalar_select %p500, %s33, 1
      %p502 = scmp.lt.s32.totalorder %s499, 1
      %s503 = scalar_select %p502, %s499, 1
      %s504 = smul.addr %s501, 2
      %s505 = sadd.s32 %s503, %s504
      %s506 = smul.addr %s505, 4
      %s507 = scalar_lea.vmem %s11, %s506
      %s508 = smul.u32 2, %s34
      %s509 = smul.u32 2, %s34
      %p510 = scmp.lt.s32.totalorder %s33, 1
      %s511 = scalar_select %p510, %s33, 1
      %p512 = scmp.lt.s32.totalorder %s509, 1
      %s513 = scalar_select %p512, %s509, 1
      %s514 = smul.addr %s511, 2
      %s515 = sadd.s32 %s513, %s514
      %s516 = scalar_lea.vmem %s12, %s515
      %s517 = smul.u32 2, %s34
      %s518 = smul.u32 2, %s34
      %p519 = scmp.lt.s32.totalorder %s33, 1
      %s520 = scalar_select %p519, %s33, 1
      %p521 = scmp.lt.s32.totalorder %s518, 1
      %s522 = scalar_select %p521, %s518, 1
      %s523 = smul.addr %s520, 2
      %s524 = sadd.s32 %s522, %s523
      %s525 = scalar_lea.vmem %s13, %s524
      %s526 = smul.u32 2, %s34
      %v528 = vld [vmem:[%s497] sm:$0xff]
      %v529 = vld [vmem:[%s1] sm:$0xff]
      %v530 = vld [vmem:[%s1 + $0x8] sm:$0xff]
      %v531 = vld [vmem:[%s1 + $0x10] sm:$0xff]
      %v532 = vld [vmem:[%s1 + $0x18] sm:$0xff]
      %v533 = vld [vmem:[%s1 + $0x20] sm:$0xff]
      %v534 = vld [vmem:[%s1 + $0x28] sm:$0xff]
      %v535 = vld [vmem:[%s1 + $0x30] sm:$0xff]
      %v536 = vld [vmem:[%s1 + $0x38] sm:$0xff]
      %v537 = vld [vmem:[%s1 + $0x40] sm:$0xff]
      %v538 = vld [vmem:[%s1 + $0x48] sm:$0xff]
      %v539 = vld [vmem:[%s1 + $0x50] sm:$0xff]
      %v540 = vld [vmem:[%s1 + $0x58] sm:$0xff]
      %v541 = vld [vmem:[%s1 + $0x60] sm:$0xff]
      %v542 = vld [vmem:[%s1 + $0x68] sm:$0xff]
      %v543 = vld [vmem:[%s1 + $0x70] sm:$0xff]
      %v544 = vld [vmem:[%s1 + $0x78] sm:$0xff]
      %v545 = vld [vmem:[%s2] sm:$0xff]
      %v546 = vld [vmem:[%s2 + $0x8] sm:$0xff]
      %v547 = vld [vmem:[%s2 + $0x10] sm:$0xff]
      %v548 = vld [vmem:[%s2 + $0x18] sm:$0xff]
      %v549 = vld [vmem:[%s2 + $0x20] sm:$0xff]
      %v550 = vld [vmem:[%s2 + $0x28] sm:$0xff]
      %v551 = vld [vmem:[%s2 + $0x30] sm:$0xff]
      %v552 = vld [vmem:[%s2 + $0x38] sm:$0xff]
      %v553 = vld [vmem:[%s2 + $0x40] sm:$0xff]
      %v554 = vld [vmem:[%s2 + $0x48] sm:$0xff]
      %v555 = vld [vmem:[%s2 + $0x50] sm:$0xff]
      %v556 = vld [vmem:[%s2 + $0x58] sm:$0xff]
      %v557 = vld [vmem:[%s2 + $0x60] sm:$0xff]
      %v558 = vld [vmem:[%s2 + $0x68] sm:$0xff]
      %v559 = vld [vmem:[%s2 + $0x70] sm:$0xff]
      %v560 = vld [vmem:[%s2 + $0x78] sm:$0xff]
      %562 = vset.pattern.permute.xlu0 0
      %563 = vperm.xlu0 %562, %v545
      %v564 = vpop.permute.xlu0 %563
      %567 = vset.pattern.permute.xlu0 0
      %568 = vperm.xlu0 %567, %v546
      %v569 = vpop.permute.xlu0 %568
      %572 = vset.pattern.permute.xlu0 0
      %573 = vperm.xlu0 %572, %v547
      %v574 = vpop.permute.xlu0 %573
      %577 = vset.pattern.permute.xlu0 0
      %578 = vperm.xlu0 %577, %v548
      %v579 = vpop.permute.xlu0 %578
      %582 = vset.pattern.permute.xlu0 0
      %583 = vperm.xlu0 %582, %v549
      %v584 = vpop.permute.xlu0 %583
      %587 = vset.pattern.permute.xlu0 0
      %588 = vperm.xlu0 %587, %v550
      %v589 = vpop.permute.xlu0 %588
      %592 = vset.pattern.permute.xlu0 0
      %593 = vperm.xlu0 %592, %v551
      %v594 = vpop.permute.xlu0 %593
      %597 = vset.pattern.permute.xlu0 0
      %598 = vperm.xlu0 %597, %v552
      %v599 = vpop.permute.xlu0 %598
      %602 = vset.pattern.permute.xlu0 0
      %603 = vperm.xlu0 %602, %v553
      %v604 = vpop.permute.xlu0 %603
      %607 = vset.pattern.permute.xlu0 0
      %608 = vperm.xlu0 %607, %v554
      %v609 = vpop.permute.xlu0 %608
      %612 = vset.pattern.permute.xlu0 0
      %613 = vperm.xlu0 %612, %v555
      %v614 = vpop.permute.xlu0 %613
      %617 = vset.pattern.permute.xlu0 0
      %618 = vperm.xlu0 %617, %v556
      %v619 = vpop.permute.xlu0 %618
      %622 = vset.pattern.permute.xlu0 0
      %623 = vperm.xlu0 %622, %v557
      %v624 = vpop.permute.xlu0 %623
      %627 = vset.pattern.permute.xlu0 0
      %628 = vperm.xlu0 %627, %v558
      %v629 = vpop.permute.xlu0 %628
      %632 = vset.pattern.permute.xlu0 0
      %633 = vperm.xlu0 %632, %v559
      %v634 = vpop.permute.xlu0 %633
      %637 = vset.pattern.permute.xlu0 0
      %638 = vperm.xlu0 %637, %v560
      %v639 = vpop.permute.xlu0 %638
      %v642 = vcombine.high %v528, %v528
      %vm643 = vcmask 31744
      %v645 = vsel %vm643, %v529, 0
      %v648 = vsel %vm643, %v530, 0
      %v651 = vsel %vm643, %v531, 0
      %v654 = vsel %vm643, %v532, 0
      %v657 = vsel %vm643, %v533, 0
      %v660 = vsel %vm643, %v534, 0
      %v663 = vsel %vm643, %v535, 0
      %v666 = vsel %vm643, %v536, 0
      %v669 = vsel %vm643, %v537, 0
      %v672 = vsel %vm643, %v538, 0
      %v675 = vsel %vm643, %v539, 0
      %v678 = vsel %vm643, %v540, 0
      %v681 = vsel %vm643, %v541, 0
      %v684 = vsel %vm643, %v542, 0
      %v687 = vsel %vm643, %v543, 0
      %v690 = vsel %vm643, %v544, 0
      %vm692 = vcmask 1043456
      %v693 = vsel %vm692, %v528, 0
      %v695 = vsel %vm692, %v642, 0
      %697 = vmatprep.subr.mxu0 %v695
      %698 = vmatpush1.msra.mxu0 %v693
      %699 = vmatprep.subr.mxu0 0.0
      %700 = vmatpush1.msra.mxu0 0.0
      %701 = vmatprep.subr.mxu0 0.0
      %702 = vmatpush1.msra.mxu0 0.0
      %703 = vmatprep.subr.mxu0 0.0
      %704 = vmatpush1.msra.mxu0 0.0
      %705 = vmatprep.subr.mxu0 0.0
      %706 = vmatpush1.msra.mxu0 0.0
      %707 = vmatprep.subr.mxu0 0.0
      %708 = vmatpush1.msra.mxu0 0.0
      %709 = vmatprep.subr.mxu0 0.0
      %710 = vmatpush1.msra.mxu0 0.0
      %711 = vmatprep.subr.mxu0 0.0
      %712 = vmatpush1.msra.mxu0 0.0
      %713 = vmatprep.subr.mxu0 0.0
      %714 = vmatpush1.msra.mxu0 0.0
      %715 = vmatprep.subr.mxu0 0.0
      %716 = vmatpush1.msra.mxu0 0.0
      %717 = vmatprep.subr.mxu0 0.0
      %718 = vmatpush1.msra.mxu0 0.0
      %719 = vmatprep.subr.mxu0 0.0
      %720 = vmatpush1.msra.mxu0 0.0
      %721 = vmatprep.subr.mxu0 0.0
      %722 = vmatpush1.msra.mxu0 0.0
      %723 = vmatprep.subr.mxu0 0.0
      %724 = vmatpush1.msra.mxu0 0.0
      %725 = vmatprep.subr.mxu0 0.0
      %726 = vmatpush1.msra.mxu0 0.0
      %727 = vmatprep.subr.mxu0 0.0
      %728 = vmatpush1.msra.mxu0 0.0
      %729 = vmatprep.subr.mxu0 0.0
      %730 = vmatpush1.msra.mxu0 0.0
      %731 = vmatprep.subr.mxu0 0.0
      %732 = vmatpush1.msra.mxu0 0.0
      %733 = vmatprep.subr.mxu0 0.0
      %734 = vmatpush1.msra.mxu0 0.0
      %735 = vmatprep.subr.mxu0 0.0
      %736 = vmatpush1.msra.mxu0 0.0
      %737 = vmatprep.subr.mxu0 0.0
      %738 = vmatpush1.msra.mxu0 0.0
      %739 = vmatprep.subr.mxu0 0.0
      %740 = vmatpush1.msra.mxu0 0.0
      %741 = vmatprep.subr.mxu0 0.0
      %742 = vmatpush1.msra.mxu0 0.0
      %743 = vmatprep.subr.mxu0 0.0
      %744 = vmatpush1.msra.mxu0 0.0
      %745 = vmatprep.subr.mxu0 0.0
      %746 = vmatpush1.msra.mxu0 0.0
      %747 = vmatprep.subr.mxu0 0.0
      %748 = vmatpush1.msra.mxu0 0.0
      %749 = vmatprep.subr.mxu0 0.0
      %750 = vmatpush1.msra.mxu0 0.0
      %751 = vmatprep.subr.mxu0 0.0
      %752 = vmatpush1.msra.mxu0 0.0
      %753 = vmatprep.subr.mxu0 0.0
      %754 = vmatpush1.msra.mxu0 0.0
      %755 = vmatprep.subr.mxu0 0.0
      %756 = vmatpush1.msra.mxu0 0.0
      %757 = vmatprep.subr.mxu0 0.0
      %758 = vmatpush1.msra.mxu0 0.0
      %759 = vmatprep.subr.mxu0 0.0
      %760 = vmatpush1.msra.mxu0 0.0
      %761 = vmatprep.mubr.f32.mxu0 0.0
      %762 = vmatmul.mubr.f32.gmra.mrb[0].mxu0 %v645
      %v763 = vpop.f32.mrb[0].mxu0
      %v764 = vadd.f32 %v564, %v763
      %v765 = vpop.f32.mrb[0].mxu0
      %v766 = vadd.f32 %v564, %v765
      %767 = vmatprep.mubr.f32.mxu0 0.0
      %768 = vmatmul.mubr.f32.gmra.mrb[0].mxu0 %v648
      %v769 = vpop.f32.mrb[0].mxu0
      %v770 = vadd.f32 %v569, %v769
      %v771 = vpop.f32.mrb[0].mxu0
      %v772 = vadd.f32 %v569, %v771
      %773 = vmatprep.mubr.f32.mxu0 0.0
      %774 = vmatmul.mubr.f32.gmra.mrb[0].mxu0 %v651
      %v775 = vpop.f32.mrb[0].mxu0
      %v776 = vadd.f32 %v574, %v775
      %v777 = vpop.f32.mrb[0].mxu0
      %v778 = vadd.f32 %v574, %v777
      %779 = vmatprep.mubr.f32.mxu0 0.0
      %780 = vmatmul.mubr.f32.gmra.mrb[0].mxu0 %v654
      %v781 = vpop.f32.mrb[0].mxu0
      %v782 = vadd.f32 %v579, %v781
      %v783 = vpop.f32.mrb[0].mxu0
      %v784 = vadd.f32 %v579, %v783
      %785 = vmatprep.mubr.f32.mxu0 0.0
      %786 = vmatmul.mubr.f32.gmra.mrb[0].mxu0 %v657
      %v787 = vpop.f32.mrb[0].mxu0
      %v788 = vadd.f32 %v584, %v787
      %v789 = vpop.f32.mrb[0].mxu0
      %v790 = vadd.f32 %v584, %v789
      %791 = vmatprep.mubr.f32.mxu0 0.0
      %792 = vmatmul.mubr.f32.gmra.mrb[0].mxu0 %v660
      %v793 = vpop.f32.mrb[0].mxu0
      %v794 = vadd.f32 %v589, %v793
      %v795 = vpop.f32.mrb[0].mxu0
      %v796 = vadd.f32 %v589, %v795
      %797 = vmatprep.mubr.f32.mxu0 0.0
      %798 = vmatmul.mubr.f32.gmra.mrb[0].mxu0 %v663
      %v799 = vpop.f32.mrb[0].mxu0
      %v800 = vadd.f32 %v594, %v799
      %v801 = vpop.f32.mrb[0].mxu0
      %v802 = vadd.f32 %v594, %v801
      %803 = vmatprep.mubr.f32.mxu0 0.0
      %804 = vmatmul.mubr.f32.gmra.mrb[0].mxu0 %v666
      %v805 = vpop.f32.mrb[0].mxu0
      %v806 = vadd.f32 %v599, %v805
      %v807 = vpop.f32.mrb[0].mxu0
      %v808 = vadd.f32 %v599, %v807
      %809 = vmatprep.mubr.f32.mxu0 0.0
      %810 = vmatmul.mubr.f32.gmra.mrb[0].mxu0 %v669
      %v811 = vpop.f32.mrb[0].mxu0
      %v812 = vadd.f32 %v604, %v811
      %v813 = vpop.f32.mrb[0].mxu0
      %v814 = vadd.f32 %v604, %v813
      %815 = vmatprep.mubr.f32.mxu0 0.0
      %816 = vmatmul.mubr.f32.gmra.mrb[0].mxu0 %v672
      %v817 = vpop.f32.mrb[0].mxu0
      %v818 = vadd.f32 %v609, %v817
      %v819 = vpop.f32.mrb[0].mxu0
      %v820 = vadd.f32 %v609, %v819
      %821 = vmatprep.mubr.f32.mxu0 0.0
      %822 = vmatmul.mubr.f32.gmra.mrb[0].mxu0 %v675
      %v823 = vpop.f32.mrb[0].mxu0
      %v824 = vadd.f32 %v614, %v823
      %v825 = vpop.f32.mrb[0].mxu0
      %v826 = vadd.f32 %v614, %v825
      %827 = vmatprep.mubr.f32.mxu0 0.0
      %828 = vmatmul.mubr.f32.gmra.mrb[0].mxu0 %v678
      %v829 = vpop.f32.mrb[0].mxu0
      %v830 = vadd.f32 %v619, %v829
      %v831 = vpop.f32.mrb[0].mxu0
      %v832 = vadd.f32 %v619, %v831
      %833 = vmatprep.mubr.f32.mxu0 0.0
      %834 = vmatmul.mubr.f32.gmra.mrb[0].mxu0 %v681
      %v835 = vpop.f32.mrb[0].mxu0
      %v836 = vadd.f32 %v624, %v835
      %v837 = vpop.f32.mrb[0].mxu0
      %v838 = vadd.f32 %v624, %v837
      %839 = vmatprep.mubr.f32.mxu0 0.0
      %840 = vmatmul.mubr.f32.gmra.mrb[0].mxu0 %v684
      %v841 = vpop.f32.mrb[0].mxu0
      %v842 = vadd.f32 %v629, %v841
      %v843 = vpop.f32.mrb[0].mxu0
      %v844 = vadd.f32 %v629, %v843
      %845 = vmatprep.mubr.f32.mxu0 0.0
      %846 = vmatmul.mubr.f32.gmra.mrb[0].mxu0 %v687
      %v847 = vpop.f32.mrb[0].mxu0
      %v848 = vadd.f32 %v634, %v847
      %v849 = vpop.f32.mrb[0].mxu0
      %v850 = vadd.f32 %v634, %v849
      %851 = vmatprep.mubr.f32.mxu0 0.0
      %852 = vmatmul.mubr.f32.gmra.mrb[0].mxu0 %v690
      %v853 = vpop.f32.mrb[0].mxu0
      %v854 = vadd.f32 %v639, %v853
      %v855 = vpop.f32.mrb[0].mxu0
      %v856 = vadd.f32 %v639, %v855
      %857 = vdwg.mxu0
      %v858 = vmax.f32 %v764, 0.0
      %v859 = vmax.f32 %v766, 0.0
      %v860 = vmax.f32 %v770, 0.0
      %v861 = vmax.f32 %v772, 0.0
      %v862 = vmax.f32 %v776, 0.0
      %v863 = vmax.f32 %v778, 0.0
      %v864 = vmax.f32 %v782, 0.0
      %v865 = vmax.f32 %v784, 0.0
      %v866 = vmax.f32 %v788, 0.0
      %v867 = vmax.f32 %v790, 0.0
      %v868 = vmax.f32 %v794, 0.0
      %v869 = vmax.f32 %v796, 0.0
      %v870 = vmax.f32 %v800, 0.0
      %v871 = vmax.f32 %v802, 0.0
      %v872 = vmax.f32 %v806, 0.0
      %v873 = vmax.f32 %v808, 0.0
      %v874 = vmax.f32 %v812, 0.0
      %v875 = vmax.f32 %v814, 0.0
      %v876 = vmax.f32 %v818, 0.0
      %v877 = vmax.f32 %v820, 0.0
      %v878 = vmax.f32 %v824, 0.0
      %v879 = vmax.f32 %v826, 0.0
      %v880 = vmax.f32 %v830, 0.0
      %v881 = vmax.f32 %v832, 0.0
      %v882 = vmax.f32 %v836, 0.0
      %v883 = vmax.f32 %v838, 0.0
      %v884 = vmax.f32 %v842, 0.0
      %v885 = vmax.f32 %v844, 0.0
      %v886 = vmax.f32 %v848, 0.0
      %v887 = vmax.f32 %v850, 0.0
      %v888 = vmax.f32 %v854, 0.0
      %v889 = vmax.f32 %v856, 0.0
      %v890 = vld [vmem:[%s3] sm:$0xf]
      %v891 = vld [vmem:[%s3 + $0x4] sm:$0xf]
      %v892 = vld [vmem:[%s3 + $0x8] sm:$0xf]
      %v893 = vld [vmem:[%s3 + $0xc] sm:$0xf]
      %v894 = vld [vmem:[%s3 + $0x10] sm:$0xf]
      %v895 = vld [vmem:[%s3 + $0x14] sm:$0xf]
      %v896 = vld [vmem:[%s3 + $0x18] sm:$0xf]
      %v897 = vld [vmem:[%s3 + $0x1c] sm:$0xf]
      %v898 = vpack.c.bf16 %v860, %v858
      %v899 = vpack.c.bf16 %v861, %v859
      %v900 = vpack.c.bf16 %v864, %v862
      %v901 = vpack.c.bf16 %v865, %v863
      %v902 = vpack.c.bf16 %v868, %v866
      %v903 = vpack.c.bf16 %v869, %v867
      %v904 = vpack.c.bf16 %v872, %v870
      %v905 = vpack.c.bf16 %v873, %v871
      %v906 = vpack.c.bf16 %v876, %v874
      %v907 = vpack.c.bf16 %v877, %v875
      %v908 = vpack.c.bf16 %v880, %v878
      %v909 = vpack.c.bf16 %v881, %v879
      %v910 = vpack.c.bf16 %v884, %v882
      %v911 = vpack.c.bf16 %v885, %v883
      %v912 = vpack.c.bf16 %v888, %v886
      %v913 = vpack.c.bf16 %v889, %v887
      %v914 = vld [vmem:[%s4] sm:$0xff]
      %v915 = vld [vmem:[%s4 + $0x8] sm:$0xff]
      %v916 = vld [vmem:[%s4 + $0x10] sm:$0xff]
      %v917 = vld [vmem:[%s4 + $0x18] sm:$0xff]
      %v918 = vld [vmem:[%s4 + $0x20] sm:$0xff]
      %v919 = vld [vmem:[%s4 + $0x28] sm:$0xff]
      %v920 = vld [vmem:[%s4 + $0x30] sm:$0xff]
      %v921 = vld [vmem:[%s4 + $0x38] sm:$0xff]
      %923 = vset.pattern.permute.xlu0 0
      %924 = vperm.xlu0 %923, %v914
      %v925 = vpop.permute.xlu0 %924
      %928 = vset.pattern.permute.xlu0 0
      %929 = vperm.xlu0 %928, %v915
      %v930 = vpop.permute.xlu0 %929
      %933 = vset.pattern.permute.xlu0 0
      %934 = vperm.xlu0 %933, %v916
      %v935 = vpop.permute.xlu0 %934
      %938 = vset.pattern.permute.xlu0 0
      %939 = vperm.xlu0 %938, %v917
      %v940 = vpop.permute.xlu0 %939
      %943 = vset.pattern.permute.xlu0 0
      %944 = vperm.xlu0 %943, %v918
      %v945 = vpop.permute.xlu0 %944
      %948 = vset.pattern.permute.xlu0 0
      %949 = vperm.xlu0 %948, %v919
      %v950 = vpop.permute.xlu0 %949
      %953 = vset.pattern.permute.xlu0 0
      %954 = vperm.xlu0 %953, %v920
      %v955 = vpop.permute.xlu0 %954
      %958 = vset.pattern.permute.xlu0 0
      %959 = vperm.xlu0 %958, %v921
      %v960 = vpop.permute.xlu0 %959
      %v970 = vunpack.c.l.b16 %v890
      %v971 = vunpack.c.l.b16 %v891
      %v972 = vunpack.c.l.b16 %v892
      %v973 = vunpack.c.l.b16 %v893
      %v974 = vunpack.c.l.b16 %v894
      %v975 = vunpack.c.l.b16 %v895
      %v976 = vunpack.c.l.b16 %v896
      %v977 = vunpack.c.l.b16 %v897
      %v978 = vpack.c.b16 %v971, %v970
      %v979 = vpack.c.b16 %v973, %v972
      %v980 = vpack.c.b16 %v975, %v974
      %v981 = vpack.c.b16 %v977, %v976
      %986 = vmatprep.subr.bf16.mxu0 %v899
      %987 = vmatpush1.bf16.msra.mxu0 %v898
      %988 = vmatprep.subr.bf16.mxu0 %v901
      %989 = vmatpush1.bf16.msra.mxu0 %v900
      %990 = vmatprep.subr.bf16.mxu0 %v903
      %991 = vmatpush1.bf16.msra.mxu0 %v902
      %992 = vmatprep.subr.bf16.mxu0 %v905
      %993 = vmatpush1.bf16.msra.mxu0 %v904
      %994 = vmatprep.subr.bf16.mxu0 %v907
      %995 = vmatpush1.bf16.msra.mxu0 %v906
      %996 = vmatprep.subr.bf16.mxu0 %v909
      %997 = vmatpush1.bf16.msra.mxu0 %v908
      %998 = vmatprep.subr.bf16.mxu0 %v911
      %999 = vmatpush1.bf16.msra.mxu0 %v910
      %1000 = vmatprep.subr.bf16.mxu0 %v913
      %1001 = vmatpush1.bf16.msra.mxu0 %v912
      %1002 = vmatprep.subr.bf16.mxu0 0
      %1003 = vmatpush1.bf16.msra.mxu0 0
      %1004 = vmatprep.subr.bf16.mxu0 0
      %1005 = vmatpush1.bf16.msra.mxu0 0
      %1006 = vmatprep.subr.bf16.mxu0 0
      %1007 = vmatpush1.bf16.msra.mxu0 0
      %1008 = vmatprep.subr.bf16.mxu0 0
      %1009 = vmatpush1.bf16.msra.mxu0 0
      %1010 = vmatprep.subr.bf16.mxu0 0
      %1011 = vmatpush1.bf16.msra.mxu0 0
      %1012 = vmatprep.subr.bf16.mxu0 0
      %1013 = vmatpush1.bf16.msra.mxu0 0
      %1014 = vmatprep.subr.bf16.mxu0 0
      %1015 = vmatpush1.bf16.msra.mxu0 0
      %1016 = vmatprep.subr.bf16.mxu0 0
      %1017 = vmatpush1.bf16.msra.mxu0 0
      %1018 = vmatprep.mubr.bf16.mxu0 0
      %1019 = vmatmul.mubr.bf16.gmra.mrb[0].mxu0 %v978
      %v1020 = vpop.f32.mrb[0].mxu0
      %v1021 = vadd.f32 %v925, %v1020
      %v1022 = vpop.f32.mrb[0].mxu0
      %v1023 = vadd.f32 %v925, %v1022
      %v1024 = vpop.f32.mrb[0].mxu0
      %v1025 = vadd.f32 %v930, %v1024
      %v1026 = vpop.f32.mrb[0].mxu0
      %v1027 = vadd.f32 %v930, %v1026
      %1028 = vmatprep.mubr.bf16.mxu0 0
      %1029 = vmatmul.mubr.bf16.gmra.mrb[0].mxu0 %v979
      %v1030 = vpop.f32.mrb[0].mxu0
      %v1031 = vadd.f32 %v935, %v1030
      %v1032 = vpop.f32.mrb[0].mxu0
      %v1033 = vadd.f32 %v935, %v1032
      %v1034 = vpop.f32.mrb[0].mxu0
      %v1035 = vadd.f32 %v940, %v1034
      %v1036 = vpop.f32.mrb[0].mxu0
      %v1037 = vadd.f32 %v940, %v1036
      %1038 = vmatprep.mubr.bf16.mxu0 0
      %1039 = vmatmul.mubr.bf16.gmra.mrb[0].mxu0 %v980
      %v1040 = vpop.f32.mrb[0].mxu0
      %v1041 = vadd.f32 %v945, %v1040
      %v1042 = vpop.f32.mrb[0].mxu0
      %v1043 = vadd.f32 %v945, %v1042
      %v1044 = vpop.f32.mrb[0].mxu0
      %v1045 = vadd.f32 %v950, %v1044
      %v1046 = vpop.f32.mrb[0].mxu0
      %v1047 = vadd.f32 %v950, %v1046
      %1048 = vmatprep.mubr.bf16.mxu0 0
      %1049 = vmatmul.mubr.bf16.gmra.mrb[0].mxu0 %v981
      %v1050 = vpop.f32.mrb[0].mxu0
      %v1051 = vadd.f32 %v955, %v1050
      %v1052 = vpop.f32.mrb[0].mxu0
      %v1053 = vadd.f32 %v955, %v1052
      %v1054 = vpop.f32.mrb[0].mxu0
      %v1055 = vadd.f32 %v960, %v1054
      %v1056 = vpop.f32.mrb[0].mxu0
      %v1057 = vadd.f32 %v960, %v1056
      %1058 = vdwg.mxu0
      %v1059 = vmax.f32 %v1021, 0.0
      %v1060 = vmax.f32 %v1023, 0.0
      %v1061 = vmax.f32 %v1025, 0.0
      %v1062 = vmax.f32 %v1027, 0.0
      %v1063 = vmax.f32 %v1031, 0.0
      %v1064 = vmax.f32 %v1033, 0.0
      %v1065 = vmax.f32 %v1035, 0.0
      %v1066 = vmax.f32 %v1037, 0.0
      %v1067 = vmax.f32 %v1041, 0.0
      %v1068 = vmax.f32 %v1043, 0.0
      %v1069 = vmax.f32 %v1045, 0.0
      %v1070 = vmax.f32 %v1047, 0.0
      %v1071 = vmax.f32 %v1051, 0.0
      %v1072 = vmax.f32 %v1053, 0.0
      %v1073 = vmax.f32 %v1055, 0.0
      %v1074 = vmax.f32 %v1057, 0.0
      %v1075 = vld [vmem:[%s5] sm:$0xf]
      %v1076 = vld [vmem:[%s5 + $0x4] sm:$0xf]
      %v1077 = vld [vmem:[%s5 + $0x8] sm:$0xf]
      %v1078 = vld [vmem:[%s5 + $0xc] sm:$0xf]
      %v1079 = vld [vmem:[%s5 + $0x10] sm:$0xf]
      %v1080 = vld [vmem:[%s5 + $0x14] sm:$0xf]
      %v1081 = vld [vmem:[%s5 + $0x18] sm:$0xf]
      %v1082 = vld [vmem:[%s5 + $0x1c] sm:$0xf]
      %v1083 = vld [vmem:[%s5 + $0x20] sm:$0x3]
      %v1084 = vpack.c.bf16 %v1061, %v1059
      %v1085 = vpack.c.bf16 %v1062, %v1060
      %v1086 = vpack.c.bf16 %v1065, %v1063
      %v1087 = vpack.c.bf16 %v1066, %v1064
      %v1088 = vpack.c.bf16 %v1069, %v1067
      %v1089 = vpack.c.bf16 %v1070, %v1068
      %v1090 = vpack.c.bf16 %v1073, %v1071
      %v1091 = vpack.c.bf16 %v1074, %v1072
      %v1092 = vld [vmem:[%s6] sm:$0xff]
      %v1093 = vld [vmem:[%s6 + $0x8] sm:$0xff]
      %v1094 = vld [vmem:[%s6 + $0x10] sm:$0xff]
      %v1095 = vld [vmem:[%s6 + $0x18] sm:$0xff]
      %v1096 = vld [vmem:[%s6 + $0x20] sm:$0xff]
      %v1097 = vld [vmem:[%s6 + $0x28] sm:$0xff]
      %v1098 = vld [vmem:[%s6 + $0x30] sm:$0xff]
      %v1099 = vld [vmem:[%s6 + $0x38] sm:$0xff]
      %v1100 = vld [vmem:[%s6 + $0x40] sm:$0xf]
      %1102 = vset.pattern.permute.xlu0 0
      %1103 = vperm.xlu0 %1102, %v1092
      %v1104 = vpop.permute.xlu0 %1103
      %1107 = vset.pattern.permute.xlu0 0
      %1108 = vperm.xlu0 %1107, %v1093
      %v1109 = vpop.permute.xlu0 %1108
      %1112 = vset.pattern.permute.xlu0 0
      %1113 = vperm.xlu0 %1112, %v1094
      %v1114 = vpop.permute.xlu0 %1113
      %1117 = vset.pattern.permute.xlu0 0
      %1118 = vperm.xlu0 %1117, %v1095
      %v1119 = vpop.permute.xlu0 %1118
      %1122 = vset.pattern.permute.xlu0 0
      %1123 = vperm.xlu0 %1122, %v1096
      %v1124 = vpop.permute.xlu0 %1123
      %1127 = vset.pattern.permute.xlu0 0
      %1128 = vperm.xlu0 %1127, %v1097
      %v1129 = vpop.permute.xlu0 %1128
      %1132 = vset.pattern.permute.xlu0 0
      %1133 = vperm.xlu0 %1132, %v1098
      %v1134 = vpop.permute.xlu0 %1133
      %1137 = vset.pattern.permute.xlu0 0
      %1138 = vperm.xlu0 %1137, %v1099
      %v1139 = vpop.permute.xlu0 %1138
      %1142 = vset.pattern.permute.xlu0 0
      %1143 = vperm.xlu0 %1142, %v1100
      %v1144 = vpop.permute.xlu0 %1143
      %v1155 = vunpack.c.l.b16 %v1075
      %v1156 = vunpack.c.l.b16 %v1076
      %v1157 = vunpack.c.l.b16 %v1077
      %v1158 = vunpack.c.l.b16 %v1078
      %v1159 = vunpack.c.l.b16 %v1079
      %v1160 = vunpack.c.l.b16 %v1080
      %v1161 = vunpack.c.l.b16 %v1081
      %v1162 = vunpack.c.l.b16 %v1082
      %v1163 = vunpack.c.l.b16 %v1083
      %v1164 = vpack.c.b16 %v1156, %v1155
      %v1165 = vpack.c.b16 %v1158, %v1157
      %v1166 = vpack.c.b16 %v1160, %v1159
      %v1167 = vpack.c.b16 %v1162, %v1161
      %v1168 = vpack.c.b16 %v1163, %v1163
      %vm1169 = vcmask 523264
      %v1171 = vsel %vm1169, %v1164, 0
      %v1174 = vsel %vm1169, %v1165, 0
      %v1177 = vsel %vm1169, %v1166, 0
      %v1180 = vsel %vm1169, %v1167, 0
      %v1183 = vsel %vm1169, %v1168, 0
      %1185 = vmatprep.subr.bf16.mxu0 %v1085
      %1186 = vmatpush1.bf16.msra.mxu0 %v1084
      %1187 = vmatprep.subr.bf16.mxu0 %v1087
      %1188 = vmatpush1.bf16.msra.mxu0 %v1086
      %1189 = vmatprep.subr.bf16.mxu0 %v1089
      %1190 = vmatpush1.bf16.msra.mxu0 %v1088
      %1191 = vmatprep.subr.bf16.mxu0 %v1091
      %1192 = vmatpush1.bf16.msra.mxu0 %v1090
      %1193 = vmatprep.subr.bf16.mxu0 0
      %1194 = vmatpush1.bf16.msra.mxu0 0
      %1195 = vmatprep.subr.bf16.mxu0 0
      %1196 = vmatpush1.bf16.msra.mxu0 0
      %1197 = vmatprep.subr.bf16.mxu0 0
      %1198 = vmatpush1.bf16.msra.mxu0 0
      %1199 = vmatprep.subr.bf16.mxu0 0
      %1200 = vmatpush1.bf16.msra.mxu0 0
      %1201 = vmatprep.subr.bf16.mxu0 0
      %1202 = vmatpush1.bf16.msra.mxu0 0
      %1203 = vmatprep.subr.bf16.mxu0 0
      %1204 = vmatpush1.bf16.msra.mxu0 0
      %1205 = vmatprep.subr.bf16.mxu0 0
      %1206 = vmatpush1.bf16.msra.mxu0 0
      %1207 = vmatprep.subr.bf16.mxu0 0
      %1208 = vmatpush1.bf16.msra.mxu0 0
      %1209 = vmatprep.subr.bf16.mxu0 0
      %1210 = vmatpush1.bf16.msra.mxu0 0
      %1211 = vmatprep.subr.bf16.mxu0 0
      %1212 = vmatpush1.bf16.msra.mxu0 0
      %1213 = vmatprep.subr.bf16.mxu0 0
      %1214 = vmatpush1.bf16.msra.mxu0 0
      %1215 = vmatprep.subr.bf16.mxu0 0
      %1216 = vmatpush1.bf16.msra.mxu0 0
      %1217 = vmatprep.mubr.bf16.mxu0 0
      %1218 = vmatmul.mubr.bf16.gmra.mrb[0].mxu0 %v1171
      %v1219 = vpop.f32.mrb[0].mxu0
      %v1220 = vadd.f32 %v1104, %v1219
      %v1221 = vpop.f32.mrb[0].mxu0
      %v1222 = vadd.f32 %v1104, %v1221
      %v1223 = vpop.f32.mrb[0].mxu0
      %v1224 = vadd.f32 %v1109, %v1223
      %v1225 = vpop.f32.mrb[0].mxu0
      %v1226 = vadd.f32 %v1109, %v1225
      %1227 = vmatprep.mubr.bf16.mxu0 0
      %1228 = vmatmul.mubr.bf16.gmra.mrb[0].mxu0 %v1174
      %v1229 = vpop.f32.mrb[0].mxu0
      %v1230 = vadd.f32 %v1114, %v1229
      %v1231 = vpop.f32.mrb[0].mxu0
      %v1232 = vadd.f32 %v1114, %v1231
      %v1233 = vpop.f32.mrb[0].mxu0
      %v1234 = vadd.f32 %v1119, %v1233
      %v1235 = vpop.f32.mrb[0].mxu0
      %v1236 = vadd.f32 %v1119, %v1235
      %1237 = vmatprep.mubr.bf16.mxu0 0
      %1238 = vmatmul.mubr.bf16.gmra.mrb[0].mxu0 %v1177
      %v1239 = vpop.f32.mrb[0].mxu0
      %v1240 = vadd.f32 %v1124, %v1239
      %v1241 = vpop.f32.mrb[0].mxu0
      %v1242 = vadd.f32 %v1124, %v1241
      %v1243 = vpop.f32.mrb[0].mxu0
      %v1244 = vadd.f32 %v1129, %v1243
      %v1245 = vpop.f32.mrb[0].mxu0
      %v1246 = vadd.f32 %v1129, %v1245
      %1247 = vmatprep.mubr.bf16.mxu0 0
      %1248 = vmatmul.mubr.bf16.gmra.mrb[0].mxu0 %v1180
      %v1249 = vpop.f32.mrb[0].mxu0
      %v1250 = vadd.f32 %v1134, %v1249
      %v1251 = vpop.f32.mrb[0].mxu0
      %v1252 = vadd.f32 %v1134, %v1251
      %v1253 = vpop.f32.mrb[0].mxu0
      %v1254 = vadd.f32 %v1139, %v1253
      %v1255 = vpop.f32.mrb[0].mxu0
      %v1256 = vadd.f32 %v1139, %v1255
      %1257 = vmatprep.mubr.bf16.mxu0 0
      %1258 = vmatmul.mubr.bf16.gmra.mrb[0].mxu0 %v1183
      %v1259 = vpop.f32.mrb[0].mxu0
      %v1260 = vadd.f32 %v1144, %v1259
      %v1261 = vpop.f32.mrb[0].mxu0
      %v1262 = vadd.f32 %v1144, %v1261
      %v1263 = vpop.f32.mrb[0].mxu0
      %v1264 = vpop.f32.mrb[0].mxu0
      %1265 = vdwg.mxu0
      %v1266 = vmax.f32 %v1220, 0.0
      %v1267 = vmax.f32 %v1222, 0.0
      %v1268 = vmax.f32 %v1224, 0.0
      %v1269 = vmax.f32 %v1226, 0.0
      %v1270 = vmax.f32 %v1230, 0.0
      %v1271 = vmax.f32 %v1232, 0.0
      %v1272 = vmax.f32 %v1234, 0.0
      %v1273 = vmax.f32 %v1236, 0.0
      %v1274 = vmax.f32 %v1240, 0.0
      %v1275 = vmax.f32 %v1242, 0.0
      %v1276 = vmax.f32 %v1244, 0.0
      %v1277 = vmax.f32 %v1246, 0.0
      %v1278 = vmax.f32 %v1250, 0.0
      %v1279 = vmax.f32 %v1252, 0.0
      %v1280 = vmax.f32 %v1254, 0.0
      %v1281 = vmax.f32 %v1256, 0.0
      %v1282 = vld [vmem:[%s7] sm:$0xff]
      %v1283 = vld [vmem:[%s7 + $0x8] sm:$0xff]
      %v1284 = vld [vmem:[%s7 + $0x10] sm:$0xff]
      %v1285 = vld [vmem:[%s7 + $0x18] sm:$0xff]
      %1287 = vset.pattern.permute.xlu0 0
      %1288 = vperm.xlu0 %1287, %v1282
      %v1289 = vpop.permute.xlu0 %1288
      %1292 = vset.pattern.permute.xlu0 0
      %1293 = vperm.xlu0 %1292, %v1283
      %v1294 = vpop.permute.xlu0 %1293
      %1297 = vset.pattern.permute.xlu0 0
      %1298 = vperm.xlu0 %1297, %v1284
      %v1299 = vpop.permute.xlu0 %1298
      %1302 = vset.pattern.permute.xlu0 0
      %1303 = vperm.xlu0 %1302, %v1285
      %v1304 = vpop.permute.xlu0 %1303
      %v1306 = vmul.f32 %v1266, %v1289
      %v1307 = vmul.f32 %v1267, %v1289
      %v1308 = vmul.f32 %v1268, %v1294
      %v1309 = vmul.f32 %v1269, %v1294
      %v1310 = vmul.f32 %v1270, %v1299
      %v1311 = vmul.f32 %v1271, %v1299
      %v1312 = vmul.f32 %v1272, %v1304
      %v1313 = vmul.f32 %v1273, %v1304
      %v1314 = vadd.f32 %v1306, %v1308
      %v1315 = vadd.f32 %v1314, %v1310
      %v1316 = vadd.f32 %v1315, %v1312
      %v1317 = vrot.slane %v1316, 4
      %v1318 = vadd.f32 %v1316, %v1317
      %v1319 = vrot.slane %v1318, 2
      %v1320 = vadd.f32 %v1318, %v1319
      %v1321 = vrot.slane %v1320, 1
      %v1322 = vadd.f32 %v1320, %v1321
      %v1323 = vadd.f32 %v1307, %v1309
      %v1324 = vadd.f32 %v1323, %v1311
      %v1325 = vadd.f32 %v1324, %v1313
      %v1326 = vrot.slane %v1325, 4
      %v1327 = vadd.f32 %v1325, %v1326
      %v1328 = vrot.slane %v1327, 2
      %v1329 = vadd.f32 %v1327, %v1328
      %v1330 = vrot.slane %v1329, 1
      %v1331 = vadd.f32 %v1329, %v1330
      %v1332 = vld [vmem:[#allocation2] sm:$0x1]
      %1334 = vset.pattern.permute.xlu0 0
      %1335 = vperm.xlu0 %1334, %v1332
      %v1336 = vpop.permute.xlu0 %1335
      %v1338 = vlaneseq
      %v1339 = vshrl.u32 %v1338, 7
      %v1340 = vsub.s32 0, %v1339
      %v1341 = vrot.slane %v1336, %v1340
      %v1342 = vadd.f32 %v1322, %v1341
      %v1343 = vadd.f32 %v1331, %v1341
      %v1344 = vxor.u32 %v1342, 2147483648
      %v1345 = vxor.u32 %v1343, 2147483648
      %v1346 = vmul.f32 %v1344, 1.442695
      %v1347 = vpow.pop %v1346
      %v1348 = vmul.f32 %v1345, 1.442695
      %v1349 = vpow.pop %v1348
      %v1350 = vadd.f32 %v1347, 1.0
      %v1351 = vadd.f32 %v1349, 1.0
      %v1352 = vrcp.pop %v1350
      %v1353 = vmul.f32 1.0, %v1352
      %v1354 = vrcp.pop %v1351
      %v1355 = vmul.f32 1.0, %v1354
      %v1356 = vld [vmem:[%s9] sm:$0xff]
      %v1357 = vld [vmem:[%s9 + $0x8] sm:$0xff]
      %v1358 = vld [vmem:[%s9 + $0x10] sm:$0xff]
      %v1359 = vld [vmem:[%s9 + $0x18] sm:$0xff]
      %1361 = vset.pattern.permute.xlu0 0
      %1362 = vperm.xlu0 %1361, %v1356
      %v1363 = vpop.permute.xlu0 %1362
      %1366 = vset.pattern.permute.xlu0 0
      %1367 = vperm.xlu0 %1366, %v1357
      %v1368 = vpop.permute.xlu0 %1367
      %1371 = vset.pattern.permute.xlu0 0
      %1372 = vperm.xlu0 %1371, %v1358
      %v1373 = vpop.permute.xlu0 %1372
      %1376 = vset.pattern.permute.xlu0 0
      %1377 = vperm.xlu0 %1376, %v1359
      %v1378 = vpop.permute.xlu0 %1377
      %v1380 = vmul.f32 %v1274, %v1363
      %v1381 = vmul.f32 %v1275, %v1363
      %v1382 = vmul.f32 %v1276, %v1368
      %v1383 = vmul.f32 %v1277, %v1368
      %v1384 = vmul.f32 %v1278, %v1373
      %v1385 = vmul.f32 %v1279, %v1373
      %v1386 = vmul.f32 %v1280, %v1378
      %v1387 = vmul.f32 %v1281, %v1378
      %v1388 = vadd.f32 %v1380, %v1382
      %v1389 = vadd.f32 %v1388, %v1384
      %v1390 = vadd.f32 %v1389, %v1386
      %v1391 = vrot.slane %v1390, 4
      %v1392 = vadd.f32 %v1390, %v1391
      %v1393 = vrot.slane %v1392, 2
      %v1394 = vadd.f32 %v1392, %v1393
      %v1395 = vrot.slane %v1394, 1
      %v1396 = vadd.f32 %v1394, %v1395
      %v1397 = vadd.f32 %v1381, %v1383
      %v1398 = vadd.f32 %v1397, %v1385
      %v1399 = vadd.f32 %v1398, %v1387
      %v1400 = vrot.slane %v1399, 4
      %v1401 = vadd.f32 %v1399, %v1400
      %v1402 = vrot.slane %v1401, 2
      %v1403 = vadd.f32 %v1401, %v1402
      %v1404 = vrot.slane %v1403, 1
      %v1405 = vadd.f32 %v1403, %v1404
      %v1406 = vld [vmem:[#allocation3] sm:$0x1]
      %1408 = vset.pattern.permute.xlu0 0
      %1409 = vperm.xlu0 %1408, %v1406
      %v1410 = vpop.permute.xlu0 %1409
      %v1412 = vlaneseq
      %v1413 = vshrl.u32 %v1412, 7
      %v1414 = vsub.s32 0, %v1413
      %v1415 = vrot.slane %v1410, %v1414
      %v1416 = vadd.f32 %v1396, %v1415
      %v1417 = vadd.f32 %v1405, %v1415
      %v1418 = vxor.u32 %v1416, 2147483648
      %v1419 = vxor.u32 %v1417, 2147483648
      %v1420 = vmul.f32 %v1418, 1.442695
      %v1421 = vpow.pop %v1420
      %v1422 = vmul.f32 %v1419, 1.442695
      %v1423 = vpow.pop %v1422
      %v1424 = vadd.f32 %v1421, 1.0
      %v1425 = vadd.f32 %v1423, 1.0
      %v1426 = vrcp.pop %v1424
      %v1427 = vmul.f32 1.0, %v1426
      %v1428 = vrcp.pop %v1425
      %v1429 = vmul.f32 1.0, %v1428
      %v1430 = vadd.f32 %v1353, %v1427
      %v1431 = vadd.f32 %v1355, %v1429
      %v1432 = vmul.f32 %v1260, %v1430
      %v1433 = vmul.f32 %v1262, %v1431
      %v1436 = vcombine.low %v1432, %v1433
      %v1438 = vmul.f32 %v528, %v1436
      %1439 = vst [vmem:[%s507] sm:$0xff] %v1438
      %v1442 = vcombine.low %v1353, %v1355
      %v1444 = vunpack.c.l.s4 1966171168
      %v1445 = vunpack.c.0.s8 %v1444
      %v1446 = vlaneseq
      %v1447 = vshrl.u32 %v1446, 7
      %v1448 = vsub.s32 %v1445, %v1447
      %v1449 = vrot.slane %v1442, %v1448
      %v1451 = vunpack.c.l.s4 1966171168
      %v1452 = vunpack.c.0.s8 %v1451
      %v1453 = vlaneseq
      %v1454 = vshrl.u32 %v1453, 7
      %v1455 = vsub.s32 %v1452, %v1454
      %v1456 = vrot.slane %v1449, %v1455
      %v1458 = vlaneseq
      %vm1459 = vcmp.ge.s32.totalorder %v1458, 0
      %vm1460 = vcmp.lt.s32.totalorder %v1458, 256
      %vm1461 = vmand %vm1459, %vm1460
      %1462 = vst.msk [vmem:[%s516] sm:$0x3] %vm1461, %v1456
      %v1465 = vcombine.low %v1427, %v1429
      %v1467 = vunpack.c.l.s4 1966171168
      %v1468 = vunpack.c.0.s8 %v1467
      %v1469 = vlaneseq
      %v1470 = vshrl.u32 %v1469, 7
      %v1471 = vsub.s32 %v1468, %v1470
      %v1472 = vrot.slane %v1465, %v1471
      %v1474 = vunpack.c.l.s4 1966171168
      %v1475 = vunpack.c.0.s8 %v1474
      %v1476 = vlaneseq
      %v1477 = vshrl.u32 %v1476, 7
      %v1478 = vsub.s32 %v1475, %v1477
      %v1479 = vrot.slane %v1472, %v1478
      %1481 = vst.msk [vmem:[%s525] sm:$0x3] %vm1461, %v1479
      %s1482 = smul.u32 2, %s34
      %p1483 = scmp.lt.s32.totalorder %s33, 1
      %s1484 = scalar_select %p1483, %s33, 1
      %p1485 = scmp.lt.s32.totalorder %s1482, 1
      %s1486 = scalar_select %p1485, %s1482, 1
      %s1487 = smul.addr %s1484, 2
      %s1488 = sadd.s32 %s1486, %s1487
      %s1489 = smul.addr %s1488, 4
      %s1490 = scalar_lea.vmem %s11, %s1489
      %s1491 = smul.u32 2, %s34
      %p1492 = scmp.lt.s32.totalorder %s33, 1
      %s1493 = scalar_select %p1492, %s33, 1
      %p1494 = scmp.lt.s32.totalorder %s1491, 1
      %s1495 = scalar_select %p1494, %s1491, 1
      %s1496 = smul.addr %s1493, 2
      %s1497 = sadd.s32 %s1495, %s1496
      %s1498 = scalar_lea.vmem %s12, %s1497
      %s1499 = smul.u32 2, %s34
      %p1500 = scmp.lt.s32.totalorder %s33, 1
      %s1501 = scalar_select %p1500, %s33, 1
      %p1502 = scmp.lt.s32.totalorder %s1499, 1
      %s1503 = scalar_select %p1502, %s1499, 1
      %s1504 = smul.addr %s1501, 2
      %s1505 = sadd.s32 %s1503, %s1504
      %s1506 = scalar_lea.vmem %s13, %s1505
      // Predicated region
      $region65: #{enhanced_color_attention.1} parent=63 // pred_check
        %p1507 = pneg %p299
      $region66: #{enhanced_color_attention.1} parent=63 // pred_check_branch
        %1509 = sbr.rel (%p1507) target = $region68
      $region67: #{enhanced_color_attention.1} parent=63 // pred_region
        %s1510 = smul.u32 2, %s34
      $region68: #{enhanced_color_attention.1} parent=63 // pred_fallthru
        _
      // Predicated region
      $region69: #{enhanced_color_attention.1} parent=63 // pred_check
        %p1511 = pneg %p327
      $region70: #{enhanced_color_attention.1} parent=63 // pred_check_branch
        %1513 = sbr.rel (%p1511) target = $region72
      $region71: #{enhanced_color_attention.1} parent=63 // pred_region
        %s1514 = smul.u32 2, %s34
      $region72: #{enhanced_color_attention.1} parent=63 // pred_fallthru
        _
      // Predicated region
      $region73: #{enhanced_color_attention.1} parent=63 // pred_check
        %p1515 = pneg %p355
      $region74: #{enhanced_color_attention.1} parent=63 // pred_check_branch
        %1517 = sbr.rel (%p1515) target = $region76
      $region75: #{enhanced_color_attention.1} parent=63 // pred_region
        %s1518 = smul.u32 2, %s34
      $region76: #{enhanced_color_attention.1} parent=63 // pred_fallthru
        _
    $region64: #{enhanced_color_attention.1} parent=5 // pred_fallthru
      _
    %p1519 = scmp.le.s32.totalorder 2, %s24
    // Predicated region
    $region77: #{enhanced_color_attention.1} parent=5 // pred_check
      %p1520 = pneg %p1519
    $region78: #{enhanced_color_attention.1} parent=5 // pred_check_branch
      %1522 = sbr.rel (%p1520) target = $region80
    $region79: #{enhanced_color_attention.1} parent=5 // pred_region
      %s1523 = ssub.s32 %s24, 2
      // Predicated region
      $region81: #{enhanced_color_attention.1} parent=79 // pred_check
        %p1524 = pneg %p305
      $region82: #{enhanced_color_attention.1} parent=79 // pred_check_branch
        %1526 = sbr.rel (%p1524) target = $region84
      $region83: #{enhanced_color_attention.1} parent=79 // pred_region
        %s1527 = smul.u32 2, %s36
        %p1528 = scmp.lt.s32.totalorder %s35, 1
        %s1529 = scalar_select %p1528, %s35, 1
        %p1530 = scmp.lt.s32.totalorder %s1527, 1
        %s1531 = scalar_select %p1530, %s1527, 1
        %s1532 = smul.addr %s1529, 2
        %s1533 = sadd.s32 %s1531, %s1532
        %s1534 = smul.addr %s1533, 4
        %s1535 = scalar_lea.vmem %s11, %s1534
      $region84: #{enhanced_color_attention.1} parent=79 // pred_fallthru
        _
      // Predicated region
      $region85: #{enhanced_color_attention.1} parent=79 // pred_check
        %p1536 = pneg %p333
      $region86: #{enhanced_color_attention.1} parent=79 // pred_check_branch
        %1538 = sbr.rel (%p1536) target = $region88
      $region87: #{enhanced_color_attention.1} parent=79 // pred_region
        %s1539 = smul.u32 2, %s36
        %p1540 = scmp.lt.s32.totalorder %s35, 1
        %s1541 = scalar_select %p1540, %s35, 1
        %p1542 = scmp.lt.s32.totalorder %s1539, 1
        %s1543 = scalar_select %p1542, %s1539, 1
        %s1544 = smul.addr %s1541, 2
        %s1545 = sadd.s32 %s1543, %s1544
        %s1546 = scalar_lea.vmem %s12, %s1545
      $region88: #{enhanced_color_attention.1} parent=79 // pred_fallthru
        _
      // Predicated region
      $region89: #{enhanced_color_attention.1} parent=79 // pred_check
        %p1547 = pneg %p361
      $region90: #{enhanced_color_attention.1} parent=79 // pred_check_branch
        %1549 = sbr.rel (%p1547) target = $region92
      $region91: #{enhanced_color_attention.1} parent=79 // pred_region
        %s1550 = smul.u32 2, %s36
        %p1551 = scmp.lt.s32.totalorder %s35, 1
        %s1552 = scalar_select %p1551, %s35, 1
        %p1553 = scmp.lt.s32.totalorder %s1550, 1
        %s1554 = scalar_select %p1553, %s1550, 1
        %s1555 = smul.addr %s1552, 2
        %s1556 = sadd.s32 %s1554, %s1555
        %s1557 = scalar_lea.vmem %s13, %s1556
      $region92: #{enhanced_color_attention.1} parent=79 // pred_fallthru
        _
    $region80: #{enhanced_color_attention.1} parent=5 // pred_fallthru
      _
  $region6: #{enhanced_color_attention.1} parent=0 // loop_footer
    %s28 = sadd.s32 1, %s24
  $region7: #{enhanced_color_attention.1} parent=0 // loop_footer_branch
    %23 = sbr.rel target = $region3
  $region8: #{enhanced_color_attention.1} parent=0 // loop_exit
    _

</llo_original>
